<compile_context>
chip_gen: v7x
topology: tpu7x:2x2x1
jax: 0.10.0
libtpu: 0.0.40
codegen_flags: <defaults>
</compile_context>

<pallas_src>
import functools

import jax
import jax.numpy as jnp
import numpy as np
from jax.experimental import pallas as pl
from jax.experimental.pallas import tpu as pltpu

HIDDEN_DIM = 32
INPUT_DIM = 1
NUM_LAYERS = 2
OUTPUT_DIM = 1


def _lstm_kernel(x_ref,                 # (B, T)   whole sequence, D=1 squeezed
                 w0i_ref, w0h_ref, b0_ref,
                 w1_ref, b1_ref,
                 wfc_ref, bfc_ref,
                 out_ref,               # (B, OUTPUT_DIM)
                 *, seq_len):
    H = HIDDEN_DIM
    B = out_ref.shape[0]

    # Load everything once; all operands stay resident in vregs/VMEM.
    x_all = x_ref[...]                  # (B, T)
    w0i = w0i_ref[...]                  # (1, 4H)
    w0h = w0h_ref[...]                  # (H, 4H)
    w1 = w1_ref[...]                    # (2H, 4H)
    wfc = wfc_ref[...]                  # (1, H)

    # Hoisted out of the time loop (JAX does not CSE broadcast_in_dim).
    b0 = jnp.broadcast_to(b0_ref[...], (B, 4 * H))
    b1 = jnp.broadcast_to(b1_ref[...], (B, 4 * H))
    lane = jax.lax.broadcasted_iota(jnp.int32, (B, 4 * H), 1)
    g_mask = (lane >= 2 * H) & (lane < 3 * H)   # columns of the 'g' gate

    def activate(gates):
        # Full 128-lane activation: one tanh + one sigmoid push on the whole
        # (B, 4H) tile, selected per-lane, instead of 4 narrow slices.
        return jnp.where(g_mask, jnp.tanh(gates), jax.nn.sigmoid(gates))

    def split_update(act, c_prev):
        i_g = act[:, 0 * H:1 * H]
        f_g = act[:, 1 * H:2 * H]
        g_g = act[:, 2 * H:3 * H]
        o_g = act[:, 3 * H:4 * H]
        c_new = f_g * c_prev + i_g * g_g
        h_new = o_g * jnp.tanh(c_new)
        return h_new, c_new

    zeros = jnp.zeros((B, H), jnp.float32)
    h0, c0, h1, c1 = zeros, zeros, zeros, zeros

    # Static unroll over time (T is small and static); state carried in vregs.
    # NOTE: assumes seq_len >= 1 (same as the PyTorch module in practice).
    for t in range(seq_len):
        x_t = x_all[:, t:t + 1]                       # (B, 1), static slice
        # layer 0: K=1 input "matmul" as a VPU broadcast multiply,
        #          plus one (B,H)@(H,4H) MXU matmul for the hidden term.
        gates0 = (x_t * w0i
                  + jnp.dot(h0, w0h, preferred_element_type=jnp.float32)
                  + b0)
        h0, c0 = split_update(activate(gates0), c0)

        # layer 1: merged ih/hh matmul on [h0_new | h1_prev] -> (B, 2H)@(2H,4H)
        hcat = jnp.concatenate([h0, h1], axis=-1)     # (B, 2H)
        gates1 = (jnp.dot(hcat, w1, preferred_element_type=jnp.float32)
                  + b1)
        h1, c1 = split_update(activate(gates1), c1)

    # Final Linear(H -> 1): VPU multiply + lane reduction (no N=1 MXU op).
    out_ref[...] = (jnp.sum(h1 * wfc, axis=-1, keepdims=True)
                    + bfc_ref[...])


@jax.jit
def lstm_forward(x, params):
    """x: (B, T, INPUT_DIM) float32. Returns (B, OUTPUT_DIM)."""
    B, T, D = x.shape
    assert D == INPUT_DIM
    x2d = x[:, :, 0]                                  # (B, T), D == 1

    w0i, w0h, b0, w1, b1, wfc, bfc = params

    vmem = pl.BlockSpec(memory_space=pltpu.MemorySpace.VMEM)
    out = pl.pallas_call(
        functools.partial(_lstm_kernel, seq_len=T),
        out_shape=jax.ShapeDtypeStruct((B, OUTPUT_DIM), jnp.float32),
        in_specs=[vmem] * 8,
        out_specs=vmem,
    )(x2d, w0i, w0h, b0, w1, b1, wfc, bfc)
    return out


def init_params(key):
    """Deterministic init mirroring PyTorch's default uniform(-1/sqrt(H), 1/sqrt(H)).

    Weights are stored pre-transposed as (in_features, 4*H); layer-1 ih/hh
    weights are vertically stacked into a single (2H, 4H) matrix; ih/hh biases
    are pre-summed; fc weight is stored as a (1, H) row.
    """
    H = HIDDEN_DIM
    k = 1.0 / np.sqrt(H)
    keys = jax.random.split(key, 10)
    u = lambda kk, shape: jax.random.uniform(kk, shape, jnp.float32, -k, k)

    # layer 0: input_dim -> H
    w0i = u(keys[0], (INPUT_DIM, 4 * H))
    w0h = u(keys[1], (H, 4 * H))
    b0 = u(keys[2], (1, 4 * H)) + u(keys[3], (1, 4 * H))      # b_ih + b_hh
    # layer 1: H -> H, ih and hh stacked: [h0_new | h1_prev] @ w1
    w1i = u(keys[4], (H, 4 * H))
    w1h = u(keys[5], (H, 4 * H))
    w1 = jnp.concatenate([w1i, w1h], axis=0)                  # (2H, 4H)
    b1 = u(keys[6], (1, 4 * H)) + u(keys[7], (1, 4 * H))
    # fc: H -> OUTPUT_DIM, stored as a (1, H) row
    kf = 1.0 / np.sqrt(H)
    wfc = jax.random.uniform(keys[8], (1, H), jnp.float32, -kf, kf)
    bfc = jax.random.uniform(keys[9], (1, OUTPUT_DIM), jnp.float32, -kf, kf)
    return (w0i, w0h, b0, w1, b1, wfc, bfc)


def lstm_forward_ref(x, params):
    """Pure-JAX reference of the same forward pass (for correctness check)."""
    w0i, w0h, b0, w1, b1, wfc, bfc = params
    B, T, D = x.shape
    H = HIDDEN_DIM

    def cell(pre, c):
        i = jax.nn.sigmoid(pre[:, 0 * H:1 * H])
        f = jax.nn.sigmoid(pre[:, 1 * H:2 * H])
        g = jnp.tanh(pre[:, 2 * H:3 * H])
        o = jax.nn.sigmoid(pre[:, 3 * H:4 * H])
        c_new = f * c + i * g
        h_new = o * jnp.tanh(c_new)
        return h_new, c_new

    h0 = jnp.zeros((B, H), jnp.float32)
    c0 = jnp.zeros((B, H), jnp.float32)
    h1 = jnp.zeros((B, H), jnp.float32)
    c1 = jnp.zeros((B, H), jnp.float32)
    for t in range(T):
        g0 = x[:, t, :] @ w0i + h0 @ w0h + b0
        h0, c0 = cell(g0, c0)
        g1 = h0 @ w1[:H] + h1 @ w1[H:] + b1
        h1, c1 = cell(g1, c1)
    return h1 @ wfc.T + bfc


if __name__ == "__main__":
    key = jax.random.PRNGKey(0)
    kp, kx = jax.random.split(key)
    params = init_params(kp)

    B, T = 2, 8
    x = jax.random.normal(kx, (B, T, INPUT_DIM), jnp.float32)

    out = lstm_forward(x, params)
    out = jax.block_until_ready(out)

    ref = lstm_forward_ref(x, params)
    np.testing.assert_allclose(np.asarray(out), np.asarray(ref),
                               rtol=1e-4, atol=1e-4)

    assert out.shape == (B, OUTPUT_DIM)
    print("KERNEL_OK")
</pallas_src>

<mosaic_0001>
module attributes {stable_mosaic.version = 11 : i64} {
  func.func @_lstm_kernel(%arg0: memref<2x8xf32, #tpu.memory_space<vmem>>, %arg1: memref<1x128xf32, #tpu.memory_space<vmem>>, %arg2: memref<32x128xf32, #tpu.memory_space<vmem>>, %arg3: memref<1x128xf32, #tpu.memory_space<vmem>>, %arg4: memref<64x128xf32, #tpu.memory_space<vmem>>, %arg5: memref<1x128xf32, #tpu.memory_space<vmem>>, %arg6: memref<1x32xf32, #tpu.memory_space<vmem>>, %arg7: memref<1x1xf32, #tpu.memory_space<vmem>>, %arg8: memref<2x1xf32, #tpu.memory_space<vmem>>) attributes {dimension_semantics = [], scalar_prefetch = 0 : i64, scratch_operands = 0 : i64, tpu.core_type = #tpu.core_type<tc>} {
    %c0 = arith.constant 0 : index
    %c0_0 = arith.constant 0 : index
    %0 = vector.load %arg0[%c0, %c0_0] : memref<2x8xf32, #tpu.memory_space<vmem>>, vector<2x8xf32>
    %c0_1 = arith.constant 0 : index
    %c0_2 = arith.constant 0 : index
    %1 = vector.load %arg1[%c0_1, %c0_2] : memref<1x128xf32, #tpu.memory_space<vmem>>, vector<1x128xf32>
    %c0_3 = arith.constant 0 : index
    %c0_4 = arith.constant 0 : index
    %2 = vector.load %arg2[%c0_3, %c0_4] : memref<32x128xf32, #tpu.memory_space<vmem>>, vector<32x128xf32>
    %c0_5 = arith.constant 0 : index
    %c0_6 = arith.constant 0 : index
    %3 = vector.load %arg4[%c0_5, %c0_6] : memref<64x128xf32, #tpu.memory_space<vmem>>, vector<64x128xf32>
    %c0_7 = arith.constant 0 : index
    %c0_8 = arith.constant 0 : index
    %4 = vector.load %arg6[%c0_7, %c0_8] : memref<1x32xf32, #tpu.memory_space<vmem>>, vector<1x32xf32>
    %c0_9 = arith.constant 0 : index
    %c0_10 = arith.constant 0 : index
    %5 = vector.load %arg3[%c0_9, %c0_10] : memref<1x128xf32, #tpu.memory_space<vmem>>, vector<1x128xf32>
    %6 = vector.shape_cast %5 : vector<1x128xf32> to vector<1x128xf32>
    %7 = vector.broadcast %6 : vector<1x128xf32> to vector<2x128xf32>
    %c0_11 = arith.constant 0 : index
    %c0_12 = arith.constant 0 : index
    %8 = vector.load %arg5[%c0_11, %c0_12] : memref<1x128xf32, #tpu.memory_space<vmem>>, vector<1x128xf32>
    %9 = vector.shape_cast %8 : vector<1x128xf32> to vector<1x128xf32>
    %10 = vector.broadcast %9 : vector<1x128xf32> to vector<2x128xf32>
    %11 = tpu.iota {dimensions = array<i32: 1>} : vector<2x128xi32>
    %c64_i32 = arith.constant 64 : i32
    %12 = vector.broadcast %c64_i32 : i32 to vector<2x128xi32>
    %13 = arith.cmpi sge, %11, %12 : vector<2x128xi32>
    %c96_i32 = arith.constant 96 : i32
    %14 = vector.broadcast %c96_i32 : i32 to vector<2x128xi32>
    %15 = arith.cmpi slt, %11, %14 : vector<2x128xi32>
    %16 = arith.andi %13, %15 : vector<2x128xi1>
    %cst = arith.constant 0.000000e+00 : f32
    %17 = vector.broadcast %cst : f32 to vector<2x32xf32>
    %18 = vector.extract_strided_slice %0 {offsets = [0, 0], sizes = [2, 1], strides = [1, 1]} : vector<2x8xf32> to vector<2x1xf32>
    %19 = vector.broadcast %18 : vector<2x1xf32> to vector<2x128xf32>
    %20 = vector.broadcast %1 : vector<1x128xf32> to vector<2x128xf32>
    %21 = arith.mulf %19, %20 : vector<2x128xf32>
    %cst_13 = arith.constant dense<0.000000e+00> : vector<2x128xf32>
    %22 = tpu.matmul %17, %2, %cst_13 {dimension_numbers = #tpu.dot_dimension_numbers<[1], [0], [0], [1], [0, 0, 1, 1], [], []>} : vector<2x32xf32>, vector<32x128xf32>, vector<2x128xf32> -> vector<2x128xf32>
    %23 = arith.addf %21, %22 : vector<2x128xf32>
    %24 = arith.addf %23, %7 : vector<2x128xf32>
    %25 = math.tanh %24 : vector<2x128xf32>
    %26 = arith.negf %24 : vector<2x128xf32>
    %27 = math.exp %26 : vector<2x128xf32>
    %cst_14 = arith.constant 1.000000e+00 : f32
    %28 = vector.broadcast %cst_14 : f32 to vector<2x128xf32>
    %29 = arith.addf %28, %27 : vector<2x128xf32>
    %30 = arith.divf %28, %29 : vector<2x128xf32>
    %31 = arith.select %16, %25, %30 : vector<2x128xi1>, vector<2x128xf32>
    %32 = vector.extract_strided_slice %31 {offsets = [0, 0], sizes = [2, 32], strides = [1, 1]} : vector<2x128xf32> to vector<2x32xf32>
    %33 = vector.extract_strided_slice %31 {offsets = [0, 32], sizes = [2, 32], strides = [1, 1]} : vector<2x128xf32> to vector<2x32xf32>
    %34 = vector.extract_strided_slice %31 {offsets = [0, 64], sizes = [2, 32], strides = [1, 1]} : vector<2x128xf32> to vector<2x32xf32>
    %35 = vector.extract_strided_slice %31 {offsets = [0, 96], sizes = [2, 32], strides = [1, 1]} : vector<2x128xf32> to vector<2x32xf32>
    %36 = arith.mulf %33, %17 : vector<2x32xf32>
    %37 = arith.mulf %32, %34 : vector<2x32xf32>
    %38 = arith.addf %36, %37 : vector<2x32xf32>
    %39 = math.tanh %38 : vector<2x32xf32>
    %40 = arith.mulf %35, %39 : vector<2x32xf32>
    %41 = tpu.concatenate %40, %17 in 1 : vector<2x32xf32>, vector<2x32xf32> -> vector<2x64xf32>
    %cst_15 = arith.constant dense<0.000000e+00> : vector<2x128xf32>
    %42 = tpu.matmul %41, %3, %cst_15 {dimension_numbers = #tpu.dot_dimension_numbers<[1], [0], [0], [1], [0, 0, 1, 1], [], []>} : vector<2x64xf32>, vector<64x128xf32>, vector<2x128xf32> -> vector<2x128xf32>
    %43 = arith.addf %42, %10 : vector<2x128xf32>
    %44 = math.tanh %43 : vector<2x128xf32>
    %45 = arith.negf %43 : vector<2x128xf32>
    %46 = math.exp %45 : vector<2x128xf32>
    %cst_16 = arith.constant 1.000000e+00 : f32
    %47 = vector.broadcast %cst_16 : f32 to vector<2x128xf32>
    %48 = arith.addf %47, %46 : vector<2x128xf32>
    %49 = arith.divf %47, %48 : vector<2x128xf32>
    %50 = arith.select %16, %44, %49 : vector<2x128xi1>, vector<2x128xf32>
    %51 = vector.extract_strided_slice %50 {offsets = [0, 0], sizes = [2, 32], strides = [1, 1]} : vector<2x128xf32> to vector<2x32xf32>
    %52 = vector.extract_strided_slice %50 {offsets = [0, 32], sizes = [2, 32], strides = [1, 1]} : vector<2x128xf32> to vector<2x32xf32>
    %53 = vector.extract_strided_slice %50 {offsets = [0, 64], sizes = [2, 32], strides = [1, 1]} : vector<2x128xf32> to vector<2x32xf32>
    %54 = vector.extract_strided_slice %50 {offsets = [0, 96], sizes = [2, 32], strides = [1, 1]} : vector<2x128xf32> to vector<2x32xf32>
    %55 = arith.mulf %52, %17 : vector<2x32xf32>
    %56 = arith.mulf %51, %53 : vector<2x32xf32>
    %57 = arith.addf %55, %56 : vector<2x32xf32>
    %58 = math.tanh %57 : vector<2x32xf32>
    %59 = arith.mulf %54, %58 : vector<2x32xf32>
    %60 = vector.extract_strided_slice %0 {offsets = [0, 1], sizes = [2, 1], strides = [1, 1]} : vector<2x8xf32> to vector<2x1xf32>
    %61 = vector.broadcast %60 : vector<2x1xf32> to vector<2x128xf32>
    %62 = vector.broadcast %1 : vector<1x128xf32> to vector<2x128xf32>
    %63 = arith.mulf %61, %62 : vector<2x128xf32>
    %cst_17 = arith.constant dense<0.000000e+00> : vector<2x128xf32>
    %64 = tpu.matmul %40, %2, %cst_17 {dimension_numbers = #tpu.dot_dimension_numbers<[1], [0], [0], [1], [0, 0, 1, 1], [], []>} : vector<2x32xf32>, vector<32x128xf32>, vector<2x128xf32> -> vector<2x128xf32>
    %65 = arith.addf %63, %64 : vector<2x128xf32>
    %66 = arith.addf %65, %7 : vector<2x128xf32>
    %67 = math.tanh %66 : vector<2x128xf32>
    %68 = arith.negf %66 : vector<2x128xf32>
    %69 = math.exp %68 : vector<2x128xf32>
    %cst_18 = arith.constant 1.000000e+00 : f32
    %70 = vector.broadcast %cst_18 : f32 to vector<2x128xf32>
    %71 = arith.addf %70, %69 : vector<2x128xf32>
    %72 = arith.divf %70, %71 : vector<2x128xf32>
    %73 = arith.select %16, %67, %72 : vector<2x128xi1>, vector<2x128xf32>
    %74 = vector.extract_strided_slice %73 {offsets = [0, 0], sizes = [2, 32], strides = [1, 1]} : vector<2x128xf32> to vector<2x32xf32>
    %75 = vector.extract_strided_slice %73 {offsets = [0, 32], sizes = [2, 32], strides = [1, 1]} : vector<2x128xf32> to vector<2x32xf32>
    %76 = vector.extract_strided_slice %73 {offsets = [0, 64], sizes = [2, 32], strides = [1, 1]} : vector<2x128xf32> to vector<2x32xf32>
    %77 = vector.extract_strided_slice %73 {offsets = [0, 96], sizes = [2, 32], strides = [1, 1]} : vector<2x128xf32> to vector<2x32xf32>
    %78 = arith.mulf %75, %38 : vector<2x32xf32>
    %79 = arith.mulf %74, %76 : vector<2x32xf32>
    %80 = arith.addf %78, %79 : vector<2x32xf32>
    %81 = math.tanh %80 : vector<2x32xf32>
    %82 = arith.mulf %77, %81 : vector<2x32xf32>
    %83 = tpu.concatenate %82, %59 in 1 : vector<2x32xf32>, vector<2x32xf32> -> vector<2x64xf32>
    %cst_19 = arith.constant dense<0.000000e+00> : vector<2x128xf32>
    %84 = tpu.matmul %83, %3, %cst_19 {dimension_numbers = #tpu.dot_dimension_numbers<[1], [0], [0], [1], [0, 0, 1, 1], [], []>} : vector<2x64xf32>, vector<64x128xf32>, vector<2x128xf32> -> vector<2x128xf32>
    %85 = arith.addf %84, %10 : vector<2x128xf32>
    %86 = math.tanh %85 : vector<2x128xf32>
    %87 = arith.negf %85 : vector<2x128xf32>
    %88 = math.exp %87 : vector<2x128xf32>
    %cst_20 = arith.constant 1.000000e+00 : f32
    %89 = vector.broadcast %cst_20 : f32 to vector<2x128xf32>
    %90 = arith.addf %89, %88 : vector<2x128xf32>
    %91 = arith.divf %89, %90 : vector<2x128xf32>
    %92 = arith.select %16, %86, %91 : vector<2x128xi1>, vector<2x128xf32>
    %93 = vector.extract_strided_slice %92 {offsets = [0, 0], sizes = [2, 32], strides = [1, 1]} : vector<2x128xf32> to vector<2x32xf32>
    %94 = vector.extract_strided_slice %92 {offsets = [0, 32], sizes = [2, 32], strides = [1, 1]} : vector<2x128xf32> to vector<2x32xf32>
    %95 = vector.extract_strided_slice %92 {offsets = [0, 64], sizes = [2, 32], strides = [1, 1]} : vector<2x128xf32> to vector<2x32xf32>
    %96 = vector.extract_strided_slice %92 {offsets = [0, 96], sizes = [2, 32], strides = [1, 1]} : vector<2x128xf32> to vector<2x32xf32>
    %97 = arith.mulf %94, %57 : vector<2x32xf32>
    %98 = arith.mulf %93, %95 : vector<2x32xf32>
    %99 = arith.addf %97, %98 : vector<2x32xf32>
    %100 = math.tanh %99 : vector<2x32xf32>
    %101 = arith.mulf %96, %100 : vector<2x32xf32>
    %102 = vector.extract_strided_slice %0 {offsets = [0, 2], sizes = [2, 1], strides = [1, 1]} : vector<2x8xf32> to vector<2x1xf32>
    %103 = vector.broadcast %102 : vector<2x1xf32> to vector<2x128xf32>
    %104 = vector.broadcast %1 : vector<1x128xf32> to vector<2x128xf32>
    %105 = arith.mulf %103, %104 : vector<2x128xf32>
    %cst_21 = arith.constant dense<0.000000e+00> : vector<2x128xf32>
    %106 = tpu.matmul %82, %2, %cst_21 {dimension_numbers = #tpu.dot_dimension_numbers<[1], [0], [0], [1], [0, 0, 1, 1], [], []>} : vector<2x32xf32>, vector<32x128xf32>, vector<2x128xf32> -> vector<2x128xf32>
    %107 = arith.addf %105, %106 : vector<2x128xf32>
    %108 = arith.addf %107, %7 : vector<2x128xf32>
    %109 = math.tanh %108 : vector<2x128xf32>
    %110 = arith.negf %108 : vector<2x128xf32>
    %111 = math.exp %110 : vector<2x128xf32>
    %cst_22 = arith.constant 1.000000e+00 : f32
    %112 = vector.broadcast %cst_22 : f32 to vector<2x128xf32>
    %113 = arith.addf %112, %111 : vector<2x128xf32>
    %114 = arith.divf %112, %113 : vector<2x128xf32>
    %115 = arith.select %16, %109, %114 : vector<2x128xi1>, vector<2x128xf32>
    %116 = vector.extract_strided_slice %115 {offsets = [0, 0], sizes = [2, 32], strides = [1, 1]} : vector<2x128xf32> to vector<2x32xf32>
    %117 = vector.extract_strided_slice %115 {offsets = [0, 32], sizes = [2, 32], strides = [1, 1]} : vector<2x128xf32> to vector<2x32xf32>
    %118 = vector.extract_strided_slice %115 {offsets = [0, 64], sizes = [2, 32], strides = [1, 1]} : vector<2x128xf32> to vector<2x32xf32>
    %119 = vector.extract_strided_slice %115 {offsets = [0, 96], sizes = [2, 32], strides = [1, 1]} : vector<2x128xf32> to vector<2x32xf32>
    %120 = arith.mulf %117, %80 : vector<2x32xf32>
    %121 = arith.mulf %116, %118 : vector<2x32xf32>
    %122 = arith.addf %120, %121 : vector<2x32xf32>
    %123 = math.tanh %122 : vector<2x32xf32>
    %124 = arith.mulf %119, %123 : vector<2x32xf32>
    %125 = tpu.concatenate %124, %101 in 1 : vector<2x32xf32>, vector<2x32xf32> -> vector<2x64xf32>
    %cst_23 = arith.constant dense<0.000000e+00> : vector<2x128xf32>
    %126 = tpu.matmul %125, %3, %cst_23 {dimension_numbers = #tpu.dot_dimension_numbers<[1], [0], [0], [1], [0, 0, 1, 1], [], []>} : vector<2x64xf32>, vector<64x128xf32>, vector<2x128xf32> -> vector<2x128xf32>
    %127 = arith.addf %126, %10 : vector<2x128xf32>
    %128 = math.tanh %127 : vector<2x128xf32>
    %129 = arith.negf %127 : vector<2x128xf32>
    %130 = math.exp %129 : vector<2x128xf32>
    %cst_24 = arith.constant 1.000000e+00 : f32
    %131 = vector.broadcast %cst_24 : f32 to vector<2x128xf32>
    %132 = arith.addf %131, %130 : vector<2x128xf32>
    %133 = arith.divf %131, %132 : vector<2x128xf32>
    %134 = arith.select %16, %128, %133 : vector<2x128xi1>, vector<2x128xf32>
    %135 = vector.extract_strided_slice %134 {offsets = [0, 0], sizes = [2, 32], strides = [1, 1]} : vector<2x128xf32> to vector<2x32xf32>
    %136 = vector.extract_strided_slice %134 {offsets = [0, 32], sizes = [2, 32], strides = [1, 1]} : vector<2x128xf32> to vector<2x32xf32>
    %137 = vector.extract_strided_slice %134 {offsets = [0, 64], sizes = [2, 32], strides = [1, 1]} : vector<2x128xf32> to vector<2x32xf32>
    %138 = vector.extract_strided_slice %134 {offsets = [0, 96], sizes = [2, 32], strides = [1, 1]} : vector<2x128xf32> to vector<2x32xf32>
    %139 = arith.mulf %136, %99 : vector<2x32xf32>
    %140 = arith.mulf %135, %137 : vector<2x32xf32>
    %141 = arith.addf %139, %140 : vector<2x32xf32>
    %142 = math.tanh %141 : vector<2x32xf32>
    %143 = arith.mulf %138, %142 : vector<2x32xf32>
    %144 = vector.extract_strided_slice %0 {offsets = [0, 3], sizes = [2, 1], strides = [1, 1]} : vector<2x8xf32> to vector<2x1xf32>
    %145 = vector.broadcast %144 : vector<2x1xf32> to vector<2x128xf32>
    %146 = vector.broadcast %1 : vector<1x128xf32> to vector<2x128xf32>
    %147 = arith.mulf %145, %146 : vector<2x128xf32>
    %cst_25 = arith.constant dense<0.000000e+00> : vector<2x128xf32>
    %148 = tpu.matmul %124, %2, %cst_25 {dimension_numbers = #tpu.dot_dimension_numbers<[1], [0], [0], [1], [0, 0, 1, 1], [], []>} : vector<2x32xf32>, vector<32x128xf32>, vector<2x128xf32> -> vector<2x128xf32>
    %149 = arith.addf %147, %148 : vector<2x128xf32>
    %150 = arith.addf %149, %7 : vector<2x128xf32>
    %151 = math.tanh %150 : vector<2x128xf32>
    %152 = arith.negf %150 : vector<2x128xf32>
    %153 = math.exp %152 : vector<2x128xf32>
    %cst_26 = arith.constant 1.000000e+00 : f32
    %154 = vector.broadcast %cst_26 : f32 to vector<2x128xf32>
    %155 = arith.addf %154, %153 : vector<2x128xf32>
    %156 = arith.divf %154, %155 : vector<2x128xf32>
    %157 = arith.select %16, %151, %156 : vector<2x128xi1>, vector<2x128xf32>
    %158 = vector.extract_strided_slice %157 {offsets = [0, 0], sizes = [2, 32], strides = [1, 1]} : vector<2x128xf32> to vector<2x32xf32>
    %159 = vector.extract_strided_slice %157 {offsets = [0, 32], sizes = [2, 32], strides = [1, 1]} : vector<2x128xf32> to vector<2x32xf32>
    %160 = vector.extract_strided_slice %157 {offsets = [0, 64], sizes = [2, 32], strides = [1, 1]} : vector<2x128xf32> to vector<2x32xf32>
    %161 = vector.extract_strided_slice %157 {offsets = [0, 96], sizes = [2, 32], strides = [1, 1]} : vector<2x128xf32> to vector<2x32xf32>
    %162 = arith.mulf %159, %122 : vector<2x32xf32>
    %163 = arith.mulf %158, %160 : vector<2x32xf32>
    %164 = arith.addf %162, %163 : vector<2x32xf32>
    %165 = math.tanh %164 : vector<2x32xf32>
    %166 = arith.mulf %161, %165 : vector<2x32xf32>
    %167 = tpu.concatenate %166, %143 in 1 : vector<2x32xf32>, vector<2x32xf32> -> vector<2x64xf32>
    %cst_27 = arith.constant dense<0.000000e+00> : vector<2x128xf32>
    %168 = tpu.matmul %167, %3, %cst_27 {dimension_numbers = #tpu.dot_dimension_numbers<[1], [0], [0], [1], [0, 0, 1, 1], [], []>} : vector<2x64xf32>, vector<64x128xf32>, vector<2x128xf32> -> vector<2x128xf32>
    %169 = arith.addf %168, %10 : vector<2x128xf32>
    %170 = math.tanh %169 : vector<2x128xf32>
    %171 = arith.negf %169 : vector<2x128xf32>
    %172 = math.exp %171 : vector<2x128xf32>
    %cst_28 = arith.constant 1.000000e+00 : f32
    %173 = vector.broadcast %cst_28 : f32 to vector<2x128xf32>
    %174 = arith.addf %173, %172 : vector<2x128xf32>
    %175 = arith.divf %173, %174 : vector<2x128xf32>
    %176 = arith.select %16, %170, %175 : vector<2x128xi1>, vector<2x128xf32>
    %177 = vector.extract_strided_slice %176 {offsets = [0, 0], sizes = [2, 32], strides = [1, 1]} : vector<2x128xf32> to vector<2x32xf32>
    %178 = vector.extract_strided_slice %176 {offsets = [0, 32], sizes = [2, 32], strides = [1, 1]} : vector<2x128xf32> to vector<2x32xf32>
    %179 = vector.extract_strided_slice %176 {offsets = [0, 64], sizes = [2, 32], strides = [1, 1]} : vector<2x128xf32> to vector<2x32xf32>
    %180 = vector.extract_strided_slice %176 {offsets = [0, 96], sizes = [2, 32], strides = [1, 1]} : vector<2x128xf32> to vector<2x32xf32>
    %181 = arith.mulf %178, %141 : vector<2x32xf32>
    %182 = arith.mulf %177, %179 : vector<2x32xf32>
    %183 = arith.addf %181, %182 : vector<2x32xf32>
    %184 = math.tanh %183 : vector<2x32xf32>
    %185 = arith.mulf %180, %184 : vector<2x32xf32>
    %186 = vector.extract_strided_slice %0 {offsets = [0, 4], sizes = [2, 1], strides = [1, 1]} : vector<2x8xf32> to vector<2x1xf32>
    %187 = vector.broadcast %186 : vector<2x1xf32> to vector<2x128xf32>
    %188 = vector.broadcast %1 : vector<1x128xf32> to vector<2x128xf32>
    %189 = arith.mulf %187, %188 : vector<2x128xf32>
    %cst_29 = arith.constant dense<0.000000e+00> : vector<2x128xf32>
    %190 = tpu.matmul %166, %2, %cst_29 {dimension_numbers = #tpu.dot_dimension_numbers<[1], [0], [0], [1], [0, 0, 1, 1], [], []>} : vector<2x32xf32>, vector<32x128xf32>, vector<2x128xf32> -> vector<2x128xf32>
    %191 = arith.addf %189, %190 : vector<2x128xf32>
    %192 = arith.addf %191, %7 : vector<2x128xf32>
    %193 = math.tanh %192 : vector<2x128xf32>
    %194 = arith.negf %192 : vector<2x128xf32>
    %195 = math.exp %194 : vector<2x128xf32>
    %cst_30 = arith.constant 1.000000e+00 : f32
    %196 = vector.broadcast %cst_30 : f32 to vector<2x128xf32>
    %197 = arith.addf %196, %195 : vector<2x128xf32>
    %198 = arith.divf %196, %197 : vector<2x128xf32>
    %199 = arith.select %16, %193, %198 : vector<2x128xi1>, vector<2x128xf32>
    %200 = vector.extract_strided_slice %199 {offsets = [0, 0], sizes = [2, 32], strides = [1, 1]} : vector<2x128xf32> to vector<2x32xf32>
    %201 = vector.extract_strided_slice %199 {offsets = [0, 32], sizes = [2, 32], strides = [1, 1]} : vector<2x128xf32> to vector<2x32xf32>
    %202 = vector.extract_strided_slice %199 {offsets = [0, 64], sizes = [2, 32], strides = [1, 1]} : vector<2x128xf32> to vector<2x32xf32>
    %203 = vector.extract_strided_slice %199 {offsets = [0, 96], sizes = [2, 32], strides = [1, 1]} : vector<2x128xf32> to vector<2x32xf32>
    %204 = arith.mulf %201, %164 : vector<2x32xf32>
    %205 = arith.mulf %200, %202 : vector<2x32xf32>
    %206 = arith.addf %204, %205 : vector<2x32xf32>
    %207 = math.tanh %206 : vector<2x32xf32>
    %208 = arith.mulf %203, %207 : vector<2x32xf32>
    %209 = tpu.concatenate %208, %185 in 1 : vector<2x32xf32>, vector<2x32xf32> -> vector<2x64xf32>
    %cst_31 = arith.constant dense<0.000000e+00> : vector<2x128xf32>
    %210 = tpu.matmul %209, %3, %cst_31 {dimension_numbers = #tpu.dot_dimension_numbers<[1], [0], [0], [1], [0, 0, 1, 1], [], []>} : vector<2x64xf32>, vector<64x128xf32>, vector<2x128xf32> -> vector<2x128xf32>
    %211 = arith.addf %210, %10 : vector<2x128xf32>
    %212 = math.tanh %211 : vector<2x128xf32>
    %213 = arith.negf %211 : vector<2x128xf32>
    %214 = math.exp %213 : vector<2x128xf32>
    %cst_32 = arith.constant 1.000000e+00 : f32
    %215 = vector.broadcast %cst_32 : f32 to vector<2x128xf32>
    %216 = arith.addf %215, %214 : vector<2x128xf32>
    %217 = arith.divf %215, %216 : vector<2x128xf32>
    %218 = arith.select %16, %212, %217 : vector<2x128xi1>, vector<2x128xf32>
    %219 = vector.extract_strided_slice %218 {offsets = [0, 0], sizes = [2, 32], strides = [1, 1]} : vector<2x128xf32> to vector<2x32xf32>
    %220 = vector.extract_strided_slice %218 {offsets = [0, 32], sizes = [2, 32], strides = [1, 1]} : vector<2x128xf32> to vector<2x32xf32>
    %221 = vector.extract_strided_slice %218 {offsets = [0, 64], sizes = [2, 32], strides = [1, 1]} : vector<2x128xf32> to vector<2x32xf32>
    %222 = vector.extract_strided_slice %218 {offsets = [0, 96], sizes = [2, 32], strides = [1, 1]} : vector<2x128xf32> to vector<2x32xf32>
    %223 = arith.mulf %220, %183 : vector<2x32xf32>
    %224 = arith.mulf %219, %221 : vector<2x32xf32>
    %225 = arith.addf %223, %224 : vector<2x32xf32>
    %226 = math.tanh %225 : vector<2x32xf32>
    %227 = arith.mulf %222, %226 : vector<2x32xf32>
    %228 = vector.extract_strided_slice %0 {offsets = [0, 5], sizes = [2, 1], strides = [1, 1]} : vector<2x8xf32> to vector<2x1xf32>
    %229 = vector.broadcast %228 : vector<2x1xf32> to vector<2x128xf32>
    %230 = vector.broadcast %1 : vector<1x128xf32> to vector<2x128xf32>
    %231 = arith.mulf %229, %230 : vector<2x128xf32>
    %cst_33 = arith.constant dense<0.000000e+00> : vector<2x128xf32>
    %232 = tpu.matmul %208, %2, %cst_33 {dimension_numbers = #tpu.dot_dimension_numbers<[1], [0], [0], [1], [0, 0, 1, 1], [], []>} : vector<2x32xf32>, vector<32x128xf32>, vector<2x128xf32> -> vector<2x128xf32>
    %233 = arith.addf %231, %232 : vector<2x128xf32>
    %234 = arith.addf %233, %7 : vector<2x128xf32>
    %235 = math.tanh %234 : vector<2x128xf32>
    %236 = arith.negf %234 : vector<2x128xf32>
    %237 = math.exp %236 : vector<2x128xf32>
    %cst_34 = arith.constant 1.000000e+00 : f32
    %238 = vector.broadcast %cst_34 : f32 to vector<2x128xf32>
    %239 = arith.addf %238, %237 : vector<2x128xf32>
    %240 = arith.divf %238, %239 : vector<2x128xf32>
    %241 = arith.select %16, %235, %240 : vector<2x128xi1>, vector<2x128xf32>
    %242 = vector.extract_strided_slice %241 {offsets = [0, 0], sizes = [2, 32], strides = [1, 1]} : vector<2x128xf32> to vector<2x32xf32>
    %243 = vector.extract_strided_slice %241 {offsets = [0, 32], sizes = [2, 32], strides = [1, 1]} : vector<2x128xf32> to vector<2x32xf32>
    %244 = vector.extract_strided_slice %241 {offsets = [0, 64], sizes = [2, 32], strides = [1, 1]} : vector<2x128xf32> to vector<2x32xf32>
    %245 = vector.extract_strided_slice %241 {offsets = [0, 96], sizes = [2, 32], strides = [1, 1]} : vector<2x128xf32> to vector<2x32xf32>
    %246 = arith.mulf %243, %206 : vector<2x32xf32>
    %247 = arith.mulf %242, %244 : vector<2x32xf32>
    %248 = arith.addf %246, %247 : vector<2x32xf32>
    %249 = math.tanh %248 : vector<2x32xf32>
    %250 = arith.mulf %245, %249 : vector<2x32xf32>
    %251 = tpu.concatenate %250, %227 in 1 : vector<2x32xf32>, vector<2x32xf32> -> vector<2x64xf32>
    %cst_35 = arith.constant dense<0.000000e+00> : vector<2x128xf32>
    %252 = tpu.matmul %251, %3, %cst_35 {dimension_numbers = #tpu.dot_dimension_numbers<[1], [0], [0], [1], [0, 0, 1, 1], [], []>} : vector<2x64xf32>, vector<64x128xf32>, vector<2x128xf32> -> vector<2x128xf32>
    %253 = arith.addf %252, %10 : vector<2x128xf32>
    %254 = math.tanh %253 : vector<2x128xf32>
    %255 = arith.negf %253 : vector<2x128xf32>
    %256 = math.exp %255 : vector<2x128xf32>
    %cst_36 = arith.constant 1.000000e+00 : f32
    %257 = vector.broadcast %cst_36 : f32 to vector<2x128xf32>
    %258 = arith.addf %257, %256 : vector<2x128xf32>
    %259 = arith.divf %257, %258 : vector<2x128xf32>
    %260 = arith.select %16, %254, %259 : vector<2x128xi1>, vector<2x128xf32>
    %261 = vector.extract_strided_slice %260 {offsets = [0, 0], sizes = [2, 32], strides = [1, 1]} : vector<2x128xf32> to vector<2x32xf32>
    %262 = vector.extract_strided_slice %260 {offsets = [0, 32], sizes = [2, 32], strides = [1, 1]} : vector<2x128xf32> to vector<2x32xf32>
    %263 = vector.extract_strided_slice %260 {offsets = [0, 64], sizes = [2, 32], strides = [1, 1]} : vector<2x128xf32> to vector<2x32xf32>
    %264 = vector.extract_strided_slice %260 {offsets = [0, 96], sizes = [2, 32], strides = [1, 1]} : vector<2x128xf32> to vector<2x32xf32>
    %265 = arith.mulf %262, %225 : vector<2x32xf32>
    %266 = arith.mulf %261, %263 : vector<2x32xf32>
    %267 = arith.addf %265, %266 : vector<2x32xf32>
    %268 = math.tanh %267 : vector<2x32xf32>
    %269 = arith.mulf %264, %268 : vector<2x32xf32>
    %270 = vector.extract_strided_slice %0 {offsets = [0, 6], sizes = [2, 1], strides = [1, 1]} : vector<2x8xf32> to vector<2x1xf32>
    %271 = vector.broadcast %270 : vector<2x1xf32> to vector<2x128xf32>
    %272 = vector.broadcast %1 : vector<1x128xf32> to vector<2x128xf32>
    %273 = arith.mulf %271, %272 : vector<2x128xf32>
    %cst_37 = arith.constant dense<0.000000e+00> : vector<2x128xf32>
    %274 = tpu.matmul %250, %2, %cst_37 {dimension_numbers = #tpu.dot_dimension_numbers<[1], [0], [0], [1], [0, 0, 1, 1], [], []>} : vector<2x32xf32>, vector<32x128xf32>, vector<2x128xf32> -> vector<2x128xf32>
    %275 = arith.addf %273, %274 : vector<2x128xf32>
    %276 = arith.addf %275, %7 : vector<2x128xf32>
    %277 = math.tanh %276 : vector<2x128xf32>
    %278 = arith.negf %276 : vector<2x128xf32>
    %279 = math.exp %278 : vector<2x128xf32>
    %cst_38 = arith.constant 1.000000e+00 : f32
    %280 = vector.broadcast %cst_38 : f32 to vector<2x128xf32>
    %281 = arith.addf %280, %279 : vector<2x128xf32>
    %282 = arith.divf %280, %281 : vector<2x128xf32>
    %283 = arith.select %16, %277, %282 : vector<2x128xi1>, vector<2x128xf32>
    %284 = vector.extract_strided_slice %283 {offsets = [0, 0], sizes = [2, 32], strides = [1, 1]} : vector<2x128xf32> to vector<2x32xf32>
    %285 = vector.extract_strided_slice %283 {offsets = [0, 32], sizes = [2, 32], strides = [1, 1]} : vector<2x128xf32> to vector<2x32xf32>
    %286 = vector.extract_strided_slice %283 {offsets = [0, 64], sizes = [2, 32], strides = [1, 1]} : vector<2x128xf32> to vector<2x32xf32>
    %287 = vector.extract_strided_slice %283 {offsets = [0, 96], sizes = [2, 32], strides = [1, 1]} : vector<2x128xf32> to vector<2x32xf32>
    %288 = arith.mulf %285, %248 : vector<2x32xf32>
    %289 = arith.mulf %284, %286 : vector<2x32xf32>
    %290 = arith.addf %288, %289 : vector<2x32xf32>
    %291 = math.tanh %290 : vector<2x32xf32>
    %292 = arith.mulf %287, %291 : vector<2x32xf32>
    %293 = tpu.concatenate %292, %269 in 1 : vector<2x32xf32>, vector<2x32xf32> -> vector<2x64xf32>
    %cst_39 = arith.constant dense<0.000000e+00> : vector<2x128xf32>
    %294 = tpu.matmul %293, %3, %cst_39 {dimension_numbers = #tpu.dot_dimension_numbers<[1], [0], [0], [1], [0, 0, 1, 1], [], []>} : vector<2x64xf32>, vector<64x128xf32>, vector<2x128xf32> -> vector<2x128xf32>
    %295 = arith.addf %294, %10 : vector<2x128xf32>
    %296 = math.tanh %295 : vector<2x128xf32>
    %297 = arith.negf %295 : vector<2x128xf32>
    %298 = math.exp %297 : vector<2x128xf32>
    %cst_40 = arith.constant 1.000000e+00 : f32
    %299 = vector.broadcast %cst_40 : f32 to vector<2x128xf32>
    %300 = arith.addf %299, %298 : vector<2x128xf32>
    %301 = arith.divf %299, %300 : vector<2x128xf32>
    %302 = arith.select %16, %296, %301 : vector<2x128xi1>, vector<2x128xf32>
    %303 = vector.extract_strided_slice %302 {offsets = [0, 0], sizes = [2, 32], strides = [1, 1]} : vector<2x128xf32> to vector<2x32xf32>
    %304 = vector.extract_strided_slice %302 {offsets = [0, 32], sizes = [2, 32], strides = [1, 1]} : vector<2x128xf32> to vector<2x32xf32>
    %305 = vector.extract_strided_slice %302 {offsets = [0, 64], sizes = [2, 32], strides = [1, 1]} : vector<2x128xf32> to vector<2x32xf32>
    %306 = vector.extract_strided_slice %302 {offsets = [0, 96], sizes = [2, 32], strides = [1, 1]} : vector<2x128xf32> to vector<2x32xf32>
    %307 = arith.mulf %304, %267 : vector<2x32xf32>
    %308 = arith.mulf %303, %305 : vector<2x32xf32>
    %309 = arith.addf %307, %308 : vector<2x32xf32>
    %310 = math.tanh %309 : vector<2x32xf32>
    %311 = arith.mulf %306, %310 : vector<2x32xf32>
    %312 = vector.extract_strided_slice %0 {offsets = [0, 7], sizes = [2, 1], strides = [1, 1]} : vector<2x8xf32> to vector<2x1xf32>
    %313 = vector.broadcast %312 : vector<2x1xf32> to vector<2x128xf32>
    %314 = vector.broadcast %1 : vector<1x128xf32> to vector<2x128xf32>
    %315 = arith.mulf %313, %314 : vector<2x128xf32>
    %cst_41 = arith.constant dense<0.000000e+00> : vector<2x128xf32>
    %316 = tpu.matmul %292, %2, %cst_41 {dimension_numbers = #tpu.dot_dimension_numbers<[1], [0], [0], [1], [0, 0, 1, 1], [], []>} : vector<2x32xf32>, vector<32x128xf32>, vector<2x128xf32> -> vector<2x128xf32>
    %317 = arith.addf %315, %316 : vector<2x128xf32>
    %318 = arith.addf %317, %7 : vector<2x128xf32>
    %319 = math.tanh %318 : vector<2x128xf32>
    %320 = arith.negf %318 : vector<2x128xf32>
    %321 = math.exp %320 : vector<2x128xf32>
    %cst_42 = arith.constant 1.000000e+00 : f32
    %322 = vector.broadcast %cst_42 : f32 to vector<2x128xf32>
    %323 = arith.addf %322, %321 : vector<2x128xf32>
    %324 = arith.divf %322, %323 : vector<2x128xf32>
    %325 = arith.select %16, %319, %324 : vector<2x128xi1>, vector<2x128xf32>
    %326 = vector.extract_strided_slice %325 {offsets = [0, 0], sizes = [2, 32], strides = [1, 1]} : vector<2x128xf32> to vector<2x32xf32>
    %327 = vector.extract_strided_slice %325 {offsets = [0, 32], sizes = [2, 32], strides = [1, 1]} : vector<2x128xf32> to vector<2x32xf32>
    %328 = vector.extract_strided_slice %325 {offsets = [0, 64], sizes = [2, 32], strides = [1, 1]} : vector<2x128xf32> to vector<2x32xf32>
    %329 = vector.extract_strided_slice %325 {offsets = [0, 96], sizes = [2, 32], strides = [1, 1]} : vector<2x128xf32> to vector<2x32xf32>
    %330 = arith.mulf %327, %290 : vector<2x32xf32>
    %331 = arith.mulf %326, %328 : vector<2x32xf32>
    %332 = arith.addf %330, %331 : vector<2x32xf32>
    %333 = math.tanh %332 : vector<2x32xf32>
    %334 = arith.mulf %329, %333 : vector<2x32xf32>
    %335 = tpu.concatenate %334, %311 in 1 : vector<2x32xf32>, vector<2x32xf32> -> vector<2x64xf32>
    %cst_43 = arith.constant dense<0.000000e+00> : vector<2x128xf32>
    %336 = tpu.matmul %335, %3, %cst_43 {dimension_numbers = #tpu.dot_dimension_numbers<[1], [0], [0], [1], [0, 0, 1, 1], [], []>} : vector<2x64xf32>, vector<64x128xf32>, vector<2x128xf32> -> vector<2x128xf32>
    %337 = arith.addf %336, %10 : vector<2x128xf32>
    %338 = math.tanh %337 : vector<2x128xf32>
    %339 = arith.negf %337 : vector<2x128xf32>
    %340 = math.exp %339 : vector<2x128xf32>
    %cst_44 = arith.constant 1.000000e+00 : f32
    %341 = vector.broadcast %cst_44 : f32 to vector<2x128xf32>
    %342 = arith.addf %341, %340 : vector<2x128xf32>
    %343 = arith.divf %341, %342 : vector<2x128xf32>
    %344 = arith.select %16, %338, %343 : vector<2x128xi1>, vector<2x128xf32>
    %345 = vector.extract_strided_slice %344 {offsets = [0, 0], sizes = [2, 32], strides = [1, 1]} : vector<2x128xf32> to vector<2x32xf32>
    %346 = vector.extract_strided_slice %344 {offsets = [0, 32], sizes = [2, 32], strides = [1, 1]} : vector<2x128xf32> to vector<2x32xf32>
    %347 = vector.extract_strided_slice %344 {offsets = [0, 64], sizes = [2, 32], strides = [1, 1]} : vector<2x128xf32> to vector<2x32xf32>
    %348 = vector.extract_strided_slice %344 {offsets = [0, 96], sizes = [2, 32], strides = [1, 1]} : vector<2x128xf32> to vector<2x32xf32>
    %349 = arith.mulf %346, %309 : vector<2x32xf32>
    %350 = arith.mulf %345, %347 : vector<2x32xf32>
    %351 = arith.addf %349, %350 : vector<2x32xf32>
    %352 = math.tanh %351 : vector<2x32xf32>
    %353 = arith.mulf %348, %352 : vector<2x32xf32>
    %354 = vector.broadcast %4 : vector<1x32xf32> to vector<2x32xf32>
    %355 = arith.mulf %353, %354 : vector<2x32xf32>
    %cst_45 = arith.constant dense<0.000000e+00> : vector<2xf32>
    %356 = vector.multi_reduction <add>, %355, %cst_45 [1] : vector<2x32xf32> to vector<2xf32>
    %357 = vector.shape_cast %356 : vector<2xf32> to vector<2x1xf32>
    %c0_46 = arith.constant 0 : index
    %c0_47 = arith.constant 0 : index
    %358 = vector.load %arg7[%c0_46, %c0_47] : memref<1x1xf32, #tpu.memory_space<vmem>>, vector<1x1xf32>
    %359 = vector.broadcast %358 : vector<1x1xf32> to vector<2x1xf32>
    %360 = arith.addf %357, %359 : vector<2x1xf32>
    %c0_48 = arith.constant 0 : index
    %c0_49 = arith.constant 0 : index
    %361 = vector.load %arg8[%c0_48, %c0_49] : memref<2x1xf32, #tpu.memory_space<vmem>>, vector<2x1xf32>
    tpu.vector_store %arg8[%c0_48, %c0_49], %360 {strides = array<i32>} : memref<2x1xf32, #tpu.memory_space<vmem>>, vector<2x1xf32>,
    return
  }
}

</mosaic_0001>

<llo_original>
// kernel: lstm_forward.1
$region0: #{lstm_forward.1}
  #allocation0 [shape = 'u32[]', space=smem, size = 0x4, offset = 0x4, fixed_abs, tag = 'smem constant byte address 0x4 - core index']
  #allocation1 [shape = 'u32[144,128]{1,0:T(1,128)}', space=vmem, size = 0x12000, scoped, tag = 'internal scratch']
  #allocation2 [shape = 'f32[1,1]{1,0:T(1,128)S(1)}', space=vmem, size = 0x200, scoped, tag = 'scoped memory for lstm_forward.1']
  %s0 = inlined_call_operand.vmem [shape: f32[2,8], index: 0, kind: input, shape index: {}]
  %s1 = inlined_call_operand.vmem [shape: f32[1,128], index: 1, kind: input, shape index: {}]
  %s2 = inlined_call_operand.hbm [shape: f32[32,128], index: 2, kind: input, shape index: {}]
  %s3 = inlined_call_operand.vmem [shape: f32[1,128], index: 3, kind: input, shape index: {}]
  %s4 = inlined_call_operand.hbm [shape: f32[64,128], index: 4, kind: input, shape index: {}]
  %s5 = inlined_call_operand.vmem [shape: f32[1,128], index: 5, kind: input, shape index: {}]
  %s6 = inlined_call_operand.vmem [shape: f32[1,32], index: 6, kind: input, shape index: {}]
  %s7 = inlined_call_operand.<no memory space> [shape: f32[1,1], index: 7, kind: input, shape index: {}]
  %s8 = inlined_call_operand.vmem [shape: f32[2,1], index: 8, kind: output, shape index: {}]
  %s9 = sld [smem:[#allocation0]]
  $region50: #{lstm_forward.1} parent=0
    _
  %s11 = ssub.s32 1, %s9
  %s12 = scalar_select 0, %s11, %s9
  %v13 = vstv %s7
  %14 = vst [vmem:[#allocation2] sm:$0x1] %v13
  $region1: #{lstm_forward.1} parent=0
    #allocation3 [shape = 'u8[16384]{0}', space=vmem, size = 0x4000, scoped, tag = 'input window, operand 2, single buffered']
    #allocation4 [shape = 's32[1]{0}', space=sflag, size = 0x4, scoped, tag = 'scoped memory for lstm_forward.1']
    #allocation5 [shape = 'u8[32768]{0}', space=vmem, size = 0x8000, scoped, tag = 'input window, operand 4, single buffered']
    #allocation6 [shape = 's32[1]{0}', space=sflag, size = 0x4, scoped, tag = 'scoped memory for lstm_forward.1']
    %15 = vsyncpa [#allocation4], 0
    %16 = vsyncpa [#allocation6], 0
    // Predicated region
    $region2: #{lstm_forward.1} parent=1 // pred_check
      _
    $region3: #{lstm_forward.1} parent=1 // pred_check_branch
      %18 = sbr.rel (0) target = $region5
    $region4: #{lstm_forward.1} parent=1 // pred_region
      _
    $region5: #{lstm_forward.1} parent=1 // pred_fallthru
      _
    // Predicated region
    $region6: #{lstm_forward.1} parent=1 // pred_check
      _
    $region7: #{lstm_forward.1} parent=1 // pred_check_branch
      %20 = sbr.rel (0) target = $region9
    $region8: #{lstm_forward.1} parent=1 // pred_region
      _
    $region9: #{lstm_forward.1} parent=1 // pred_fallthru
      _
    // Predicated region
    $region10: #{lstm_forward.1} parent=1 // pred_check
      _
    $region11: #{lstm_forward.1} parent=1 // pred_check_branch
      %22 = sbr.rel (0) target = $region13
    $region12: #{lstm_forward.1} parent=1 // pred_region
      %s24 = ssub.s32 512, 512
      %25 = vsyncadd [#allocation4], %s24
      %s26 = sshll.u32 [#allocation3], 4
      %s27 = int_to_ptr.vmem [resolvable:$true] %s26
      %32 = dma.hbm_to_vmem [thread:$0]  %s2, 512, %s27, [#allocation4], 128, 128, 8
    $region13: #{lstm_forward.1} parent=1 // pred_fallthru
      _
    // Predicated region
    $region14: #{lstm_forward.1} parent=1 // pred_check
      _
    $region15: #{lstm_forward.1} parent=1 // pred_check_branch
      %34 = sbr.rel (0) target = $region17
    $region16: #{lstm_forward.1} parent=1 // pred_region
      _
    $region17: #{lstm_forward.1} parent=1 // pred_fallthru
      _
    // Predicated region
    $region18: #{lstm_forward.1} parent=1 // pred_check
      _
    $region19: #{lstm_forward.1} parent=1 // pred_check_branch
      %36 = sbr.rel (0) target = $region21
    $region20: #{lstm_forward.1} parent=1 // pred_region
      %s38 = ssub.s32 1024, 1024
      %39 = vsyncadd [#allocation6], %s38
      %s40 = sshll.u32 [#allocation5], 4
      %s41 = int_to_ptr.vmem [resolvable:$true] %s40
      %46 = dma.hbm_to_vmem [thread:$0]  %s4, 1024, %s41, [#allocation6], 128, 128, 8
    $region21: #{lstm_forward.1} parent=1 // pred_fallthru
      _
    // Predicated region
    $region22: #{lstm_forward.1} parent=1 // pred_check
      _
    $region23: #{lstm_forward.1} parent=1 // pred_check_branch
      %48 = sbr.rel (0) target = $region25
    $region24: #{lstm_forward.1} parent=1 // pred_region
      _
    $region25: #{lstm_forward.1} parent=1 // pred_fallthru
      _
    // Predicated region
    $region26: #{lstm_forward.1} parent=1 // pred_check
      _
    $region27: #{lstm_forward.1} parent=1 // pred_check_branch
      %50 = sbr.rel (0) target = $region29
    $region28: #{lstm_forward.1} parent=1 // pred_region
      _
    $region29: #{lstm_forward.1} parent=1 // pred_fallthru
      _
    // Predicated region
    $region30: #{lstm_forward.1} parent=1 // pred_check
      _
    $region31: #{lstm_forward.1} parent=1 // pred_check_branch
      %52 = sbr.rel (0) target = $region33
    $region32: #{lstm_forward.1} parent=1 // pred_region
      _
    $region33: #{lstm_forward.1} parent=1 // pred_fallthru
      _
    // Predicated region
    $region34: #{lstm_forward.1} parent=1 // pred_check
      _
    $region35: #{lstm_forward.1} parent=1 // pred_check_branch
      %54 = sbr.rel (0) target = $region37
    $region36: #{lstm_forward.1} parent=1 // pred_region
      %55 = dma.done [#allocation4], 512
    $region37: #{lstm_forward.1} parent=1 // pred_fallthru
      _
    // Predicated region
    $region38: #{lstm_forward.1} parent=1 // pred_check
      _
    $region39: #{lstm_forward.1} parent=1 // pred_check_branch
      %57 = sbr.rel (0) target = $region41
    $region40: #{lstm_forward.1} parent=1 // pred_region
      %58 = dma.done [#allocation6], 1024
    $region41: #{lstm_forward.1} parent=1 // pred_fallthru
      _
    %v59 = vld [vmem:[%s0] sm:$0x3]
    %v60 = vld [vmem:[%s1] sm:$0x1]
    %v61 = vld [vmem:[#allocation3] sm:$0xff]
    %v62 = vld [vmem:[#allocation3 + $0x8] sm:$0xff]
    %v63 = vld [vmem:[#allocation3 + $0x10] sm:$0xff]
    %v64 = vld [vmem:[#allocation3 + $0x18] sm:$0xff]
    %v65 = vld [vmem:[#allocation5] sm:$0xff]
    %v66 = vld [vmem:[#allocation5 + $0x8] sm:$0xff]
    %v67 = vld [vmem:[#allocation5 + $0x10] sm:$0xff]
    %v68 = vld [vmem:[#allocation5 + $0x18] sm:$0xff]
    %v69 = vld [vmem:[#allocation5 + $0x20] sm:$0xff]
    %v70 = vld [vmem:[#allocation5 + $0x28] sm:$0xff]
    %v71 = vld [vmem:[#allocation5 + $0x30] sm:$0xff]
    %v72 = vld [vmem:[#allocation5 + $0x38] sm:$0xff]
    %v73 = vld [vmem:[%s6] sm:$0x1]
    %v74 = vld [vmem:[%s3] sm:$0x1]
    %v76 = vlaneseq
    %v77 = vshrl.u32 %v76, 7
    %v78 = vsub.s32 0, %v77
    %v79 = vrot.slane %v74, %v78
    %v81 = vld [vmem:[%s5] sm:$0x1]
    %v83 = vlaneseq
    %v84 = vshrl.u32 %v83, 7
    %v85 = vsub.s32 0, %v84
    %v86 = vrot.slane %v81, %v85
    %v88 = vlaneseq
    %v89 = vand.u32 %v88, 127
    %vm90 = vcmp.ge.s32.totalorder %v89, 64
    %vm91 = vcmp.lt.s32.totalorder %v89, 96
    %vm92 = vmand %vm90, %vm91
    %94 = vset.pattern.permute.xlu0 0
    %95 = vperm.xlu0 %94, %v59
    %v96 = vpop.permute.xlu0 %95
    %v99 = vlaneseq
    %v100 = vshrl.u32 %v99, 7
    %v101 = vsub.s32 0, %v100
    %v102 = vrot.slane %v60, %v101
    %v104 = vmul.f32 %v96, %v102
    %vm105 = vcmask 261120
    %v107 = vsel %vm105, 0.0, 0
    %109 = vmatprep.subr.mxu0 0.0
    %110 = vmatpush1.msra.mxu0 %v61
    %111 = vmatprep.subr.mxu0 0.0
    %112 = vmatpush1.msra.mxu0 %v62
    %113 = vmatprep.subr.mxu0 0.0
    %114 = vmatpush1.msra.mxu0 %v63
    %115 = vmatprep.subr.mxu0 0.0
    %116 = vmatpush1.msra.mxu0 %v64
    %117 = vmatprep.subr.mxu0 0.0
    %118 = vmatpush1.msra.mxu0 0.0
    %119 = vmatprep.subr.mxu0 0.0
    %120 = vmatpush1.msra.mxu0 0.0
    %121 = vmatprep.subr.mxu0 0.0
    %122 = vmatpush1.msra.mxu0 0.0
    %123 = vmatprep.subr.mxu0 0.0
    %124 = vmatpush1.msra.mxu0 0.0
    %125 = vmatprep.subr.mxu0 0.0
    %126 = vmatpush1.msra.mxu0 0.0
    %127 = vmatprep.subr.mxu0 0.0
    %128 = vmatpush1.msra.mxu0 0.0
    %129 = vmatprep.subr.mxu0 0.0
    %130 = vmatpush1.msra.mxu0 0.0
    %131 = vmatprep.subr.mxu0 0.0
    %132 = vmatpush1.msra.mxu0 0.0
    %133 = vmatprep.subr.mxu0 0.0
    %134 = vmatpush1.msra.mxu0 0.0
    %135 = vmatprep.subr.mxu0 0.0
    %136 = vmatpush1.msra.mxu0 0.0
    %137 = vmatprep.subr.mxu0 0.0
    %138 = vmatpush1.msra.mxu0 0.0
    %139 = vmatprep.subr.mxu0 0.0
    %140 = vmatpush1.msra.mxu0 0.0
    %141 = vmatprep.subr.mxu0 0.0
    %142 = vmatpush1.msra.mxu0 0.0
    %143 = vmatprep.subr.mxu0 0.0
    %144 = vmatpush1.msra.mxu0 0.0
    %145 = vmatprep.subr.mxu0 0.0
    %146 = vmatpush1.msra.mxu0 0.0
    %147 = vmatprep.subr.mxu0 0.0
    %148 = vmatpush1.msra.mxu0 0.0
    %149 = vmatprep.subr.mxu0 0.0
    %150 = vmatpush1.msra.mxu0 0.0
    %151 = vmatprep.subr.mxu0 0.0
    %152 = vmatpush1.msra.mxu0 0.0
    %153 = vmatprep.subr.mxu0 0.0
    %154 = vmatpush1.msra.mxu0 0.0
    %155 = vmatprep.subr.mxu0 0.0
    %156 = vmatpush1.msra.mxu0 0.0
    %157 = vmatprep.subr.mxu0 0.0
    %158 = vmatpush1.msra.mxu0 0.0
    %159 = vmatprep.subr.mxu0 0.0
    %160 = vmatpush1.msra.mxu0 0.0
    %161 = vmatprep.subr.mxu0 0.0
    %162 = vmatpush1.msra.mxu0 0.0
    %163 = vmatprep.subr.mxu0 0.0
    %164 = vmatpush1.msra.mxu0 0.0
    %165 = vmatprep.subr.mxu0 0.0
    %166 = vmatpush1.msra.mxu0 0.0
    %167 = vmatprep.subr.mxu0 0.0
    %168 = vmatpush1.msra.mxu0 0.0
    %169 = vmatprep.subr.mxu0 0.0
    %170 = vmatpush1.msra.mxu0 0.0
    %171 = vmatprep.subr.mxu0 0.0
    %172 = vmatpush1.msra.mxu0 0.0
    %173 = vmatprep.mubr.f32.mxu0 0.0
    %174 = vmatmul.mubr.f32.gmra.mrb[0].mxu0 %v107
    %v175 = vpop.f32.mrb[0].mxu0
    %v176 = vadd.f32 0.0, %v175
    %v177 = vpop.f32.mrb[0].mxu0
    %178 = vdwg.mxu0
    %v179 = vadd.f32 %v104, %v176
    %v180 = vadd.f32 %v179, %v79
    %v181 = vtanh.pop %v180
    %v182 = vxor.u32 %v180, 2147483648
    %v183 = vmul.f32 %v182, 1.442695
    %v184 = vpow.pop %v183
    %v185 = vadd.f32 %v184, 1.0
    %v186 = vrcp.pop %v185
    %v187 = vmul.f32 1.0, %v186
    %v188 = vsel %vm92, %v181, %v187
    %v189 = vmul.f32 %v188, 0.0
    %191 = vrot.lane.b32.xlu0 %v188, 64
    %v192 = vpop.permute.xlu0 %191
    %v194 = vmul.f32 %v188, %v192
    %196 = vrot.lane.b32.xlu0 %v194, 32
    %v197 = vpop.permute.xlu0 %196
    %v199 = vadd.f32 %v189, %v197
    %v200 = vtanh.pop %v199
    %202 = vrot.lane.b32.xlu0 %v200, 64
    %v203 = vpop.permute.xlu0 %202
    %v205 = vmul.f32 %v188, %v203
    %207 = vrot.lane.b32.xlu0 %v205, 32
    %v208 = vpop.permute.xlu0 %207
    %v210 = vsel %vm105, %v208, 0.0
    %vm211 = vcmask 523264
    %v213 = vsel %vm211, %v210, 0
    %215 = vmatprep.subr.mxu0 0.0
    %216 = vmatpush1.msra.mxu0 %v65
    %217 = vmatprep.subr.mxu0 0.0
    %218 = vmatpush1.msra.mxu0 %v66
    %219 = vmatprep.subr.mxu0 0.0
    %220 = vmatpush1.msra.mxu0 %v67
    %221 = vmatprep.subr.mxu0 0.0
    %222 = vmatpush1.msra.mxu0 %v68
    %223 = vmatprep.subr.mxu0 0.0
    %224 = vmatpush1.msra.mxu0 %v69
    %225 = vmatprep.subr.mxu0 0.0
    %226 = vmatpush1.msra.mxu0 %v70
    %227 = vmatprep.subr.mxu0 0.0
    %228 = vmatpush1.msra.mxu0 %v71
    %229 = vmatprep.subr.mxu0 0.0
    %230 = vmatpush1.msra.mxu0 %v72
    %231 = vmatprep.subr.mxu0 0.0
    %232 = vmatpush1.msra.mxu0 0.0
    %233 = vmatprep.subr.mxu0 0.0
    %234 = vmatpush1.msra.mxu0 0.0
    %235 = vmatprep.subr.mxu0 0.0
    %236 = vmatpush1.msra.mxu0 0.0
    %237 = vmatprep.subr.mxu0 0.0
    %238 = vmatpush1.msra.mxu0 0.0
    %239 = vmatprep.subr.mxu0 0.0
    %240 = vmatpush1.msra.mxu0 0.0
    %241 = vmatprep.subr.mxu0 0.0
    %242 = vmatpush1.msra.mxu0 0.0
    %243 = vmatprep.subr.mxu0 0.0
    %244 = vmatpush1.msra.mxu0 0.0
    %245 = vmatprep.subr.mxu0 0.0
    %246 = vmatpush1.msra.mxu0 0.0
    %247 = vmatprep.subr.mxu0 0.0
    %248 = vmatpush1.msra.mxu0 0.0
    %249 = vmatprep.subr.mxu0 0.0
    %250 = vmatpush1.msra.mxu0 0.0
    %251 = vmatprep.subr.mxu0 0.0
    %252 = vmatpush1.msra.mxu0 0.0
    %253 = vmatprep.subr.mxu0 0.0
    %254 = vmatpush1.msra.mxu0 0.0
    %255 = vmatprep.subr.mxu0 0.0
    %256 = vmatpush1.msra.mxu0 0.0
    %257 = vmatprep.subr.mxu0 0.0
    %258 = vmatpush1.msra.mxu0 0.0
    %259 = vmatprep.subr.mxu0 0.0
    %260 = vmatpush1.msra.mxu0 0.0
    %261 = vmatprep.subr.mxu0 0.0
    %262 = vmatpush1.msra.mxu0 0.0
    %263 = vmatprep.subr.mxu0 0.0
    %264 = vmatpush1.msra.mxu0 0.0
    %265 = vmatprep.subr.mxu0 0.0
    %266 = vmatpush1.msra.mxu0 0.0
    %267 = vmatprep.subr.mxu0 0.0
    %268 = vmatpush1.msra.mxu0 0.0
    %269 = vmatprep.subr.mxu0 0.0
    %270 = vmatpush1.msra.mxu0 0.0
    %271 = vmatprep.subr.mxu0 0.0
    %272 = vmatpush1.msra.mxu0 0.0
    %273 = vmatprep.subr.mxu0 0.0
    %274 = vmatpush1.msra.mxu0 0.0
    %275 = vmatprep.subr.mxu0 0.0
    %276 = vmatpush1.msra.mxu0 0.0
    %277 = vmatprep.subr.mxu0 0.0
    %278 = vmatpush1.msra.mxu0 0.0
    %279 = vmatprep.mubr.f32.mxu0 0.0
    %280 = vmatmul.mubr.f32.gmra.mrb[0].mxu0 %v213
    %v281 = vpop.f32.mrb[0].mxu0
    %v282 = vadd.f32 %v86, %v281
    %v283 = vpop.f32.mrb[0].mxu0
    %284 = vdwg.mxu0
    %v285 = vtanh.pop %v282
    %v286 = vxor.u32 %v282, 2147483648
    %v287 = vmul.f32 %v286, 1.442695
    %v288 = vpow.pop %v287
    %v289 = vadd.f32 %v288, 1.0
    %v290 = vrcp.pop %v289
    %v291 = vmul.f32 1.0, %v290
    %v292 = vsel %vm92, %v285, %v291
    %v293 = vmul.f32 %v292, 0.0
    %295 = vrot.lane.b32.xlu0 %v292, 64
    %v296 = vpop.permute.xlu0 %295
    %v298 = vmul.f32 %v292, %v296
    %300 = vrot.lane.b32.xlu0 %v298, 32
    %v301 = vpop.permute.xlu0 %300
    %v303 = vadd.f32 %v293, %v301
    %v304 = vtanh.pop %v303
    %306 = vrot.lane.b32.xlu0 %v304, 64
    %v307 = vpop.permute.xlu0 %306
    %v309 = vmul.f32 %v292, %v307
    %310 = vset.pattern.permute.xlu0 1
    %311 = vperm.xlu0 %310, %v59
    %v312 = vpop.permute.xlu0 %311
    %v314 = vmul.f32 %v312, %v102
    %v315 = vsel %vm105, %v208, 0
    %317 = vmatprep.subr.mxu0 0.0
    %318 = vmatpush1.msra.mxu0 %v61
    %319 = vmatprep.subr.mxu0 0.0
    %320 = vmatpush1.msra.mxu0 %v62
    %321 = vmatprep.subr.mxu0 0.0
    %322 = vmatpush1.msra.mxu0 %v63
    %323 = vmatprep.subr.mxu0 0.0
    %324 = vmatpush1.msra.mxu0 %v64
    %325 = vmatprep.subr.mxu0 0.0
    %326 = vmatpush1.msra.mxu0 0.0
    %327 = vmatprep.subr.mxu0 0.0
    %328 = vmatpush1.msra.mxu0 0.0
    %329 = vmatprep.subr.mxu0 0.0
    %330 = vmatpush1.msra.mxu0 0.0
    %331 = vmatprep.subr.mxu0 0.0
    %332 = vmatpush1.msra.mxu0 0.0
    %333 = vmatprep.subr.mxu0 0.0
    %334 = vmatpush1.msra.mxu0 0.0
    %335 = vmatprep.subr.mxu0 0.0
    %336 = vmatpush1.msra.mxu0 0.0
    %337 = vmatprep.subr.mxu0 0.0
    %338 = vmatpush1.msra.mxu0 0.0
    %339 = vmatprep.subr.mxu0 0.0
    %340 = vmatpush1.msra.mxu0 0.0
    %341 = vmatprep.subr.mxu0 0.0
    %342 = vmatpush1.msra.mxu0 0.0
    %343 = vmatprep.subr.mxu0 0.0
    %344 = vmatpush1.msra.mxu0 0.0
    %345 = vmatprep.subr.mxu0 0.0
    %346 = vmatpush1.msra.mxu0 0.0
    %347 = vmatprep.subr.mxu0 0.0
    %348 = vmatpush1.msra.mxu0 0.0
    %349 = vmatprep.subr.mxu0 0.0
    %350 = vmatpush1.msra.mxu0 0.0
    %351 = vmatprep.subr.mxu0 0.0
    %352 = vmatpush1.msra.mxu0 0.0
    %353 = vmatprep.subr.mxu0 0.0
    %354 = vmatpush1.msra.mxu0 0.0
    %355 = vmatprep.subr.mxu0 0.0
    %356 = vmatpush1.msra.mxu0 0.0
    %357 = vmatprep.subr.mxu0 0.0
    %358 = vmatpush1.msra.mxu0 0.0
    %359 = vmatprep.subr.mxu0 0.0
    %360 = vmatpush1.msra.mxu0 0.0
    %361 = vmatprep.subr.mxu0 0.0
    %362 = vmatpush1.msra.mxu0 0.0
    %363 = vmatprep.subr.mxu0 0.0
    %364 = vmatpush1.msra.mxu0 0.0
    %365 = vmatprep.subr.mxu0 0.0
    %366 = vmatpush1.msra.mxu0 0.0
    %367 = vmatprep.subr.mxu0 0.0
    %368 = vmatpush1.msra.mxu0 0.0
    %369 = vmatprep.subr.mxu0 0.0
    %370 = vmatpush1.msra.mxu0 0.0
    %371 = vmatprep.subr.mxu0 0.0
    %372 = vmatpush1.msra.mxu0 0.0
    %373 = vmatprep.subr.mxu0 0.0
    %374 = vmatpush1.msra.mxu0 0.0
    %375 = vmatprep.subr.mxu0 0.0
    %376 = vmatpush1.msra.mxu0 0.0
    %377 = vmatprep.subr.mxu0 0.0
    %378 = vmatpush1.msra.mxu0 0.0
    %379 = vmatprep.subr.mxu0 0.0
    %380 = vmatpush1.msra.mxu0 0.0
    %381 = vmatprep.mubr.f32.mxu0 0.0
    %382 = vmatmul.mubr.f32.gmra.mrb[0].mxu0 %v315
    %v383 = vpop.f32.mrb[0].mxu0
    %v384 = vadd.f32 0.0, %v383
    %v385 = vpop.f32.mrb[0].mxu0
    %386 = vdwg.mxu0
    %v387 = vadd.f32 %v314, %v384
    %v388 = vadd.f32 %v387, %v79
    %v389 = vtanh.pop %v388
    %v390 = vxor.u32 %v388, 2147483648
    %v391 = vmul.f32 %v390, 1.442695
    %v392 = vpow.pop %v391
    %v393 = vadd.f32 %v392, 1.0
    %v394 = vrcp.pop %v393
    %v395 = vmul.f32 1.0, %v394
    %v396 = vsel %vm92, %v389, %v395
    %v397 = vmul.f32 %v396, %v199
    %399 = vrot.lane.b32.xlu0 %v396, 64
    %v400 = vpop.permute.xlu0 %399
    %v402 = vmul.f32 %v396, %v400
    %404 = vrot.lane.b32.xlu0 %v402, 32
    %v405 = vpop.permute.xlu0 %404
    %v407 = vadd.f32 %v397, %v405
    %v408 = vtanh.pop %v407
    %410 = vrot.lane.b32.xlu0 %v408, 64
    %v411 = vpop.permute.xlu0 %410
    %v413 = vmul.f32 %v396, %v411
    %415 = vrot.lane.b32.xlu0 %v413, 32
    %v416 = vpop.permute.xlu0 %415
    %419 = vrot.lane.b32.xlu0 %v309, 64
    %v420 = vpop.permute.xlu0 %419
    %v422 = vsel %vm105, %v416, %v420
    %v424 = vsel %vm211, %v422, 0
    %426 = vmatprep.subr.mxu0 0.0
    %427 = vmatpush1.msra.mxu0 %v65
    %428 = vmatprep.subr.mxu0 0.0
    %429 = vmatpush1.msra.mxu0 %v66
    %430 = vmatprep.subr.mxu0 0.0
    %431 = vmatpush1.msra.mxu0 %v67
    %432 = vmatprep.subr.mxu0 0.0
    %433 = vmatpush1.msra.mxu0 %v68
    %434 = vmatprep.subr.mxu0 0.0
    %435 = vmatpush1.msra.mxu0 %v69
    %436 = vmatprep.subr.mxu0 0.0
    %437 = vmatpush1.msra.mxu0 %v70
    %438 = vmatprep.subr.mxu0 0.0
    %439 = vmatpush1.msra.mxu0 %v71
    %440 = vmatprep.subr.mxu0 0.0
    %441 = vmatpush1.msra.mxu0 %v72
    %442 = vmatprep.subr.mxu0 0.0
    %443 = vmatpush1.msra.mxu0 0.0
    %444 = vmatprep.subr.mxu0 0.0
    %445 = vmatpush1.msra.mxu0 0.0
    %446 = vmatprep.subr.mxu0 0.0
    %447 = vmatpush1.msra.mxu0 0.0
    %448 = vmatprep.subr.mxu0 0.0
    %449 = vmatpush1.msra.mxu0 0.0
    %450 = vmatprep.subr.mxu0 0.0
    %451 = vmatpush1.msra.mxu0 0.0
    %452 = vmatprep.subr.mxu0 0.0
    %453 = vmatpush1.msra.mxu0 0.0
    %454 = vmatprep.subr.mxu0 0.0
    %455 = vmatpush1.msra.mxu0 0.0
    %456 = vmatprep.subr.mxu0 0.0
    %457 = vmatpush1.msra.mxu0 0.0
    %458 = vmatprep.subr.mxu0 0.0
    %459 = vmatpush1.msra.mxu0 0.0
    %460 = vmatprep.subr.mxu0 0.0
    %461 = vmatpush1.msra.mxu0 0.0
    %462 = vmatprep.subr.mxu0 0.0
    %463 = vmatpush1.msra.mxu0 0.0
    %464 = vmatprep.subr.mxu0 0.0
    %465 = vmatpush1.msra.mxu0 0.0
    %466 = vmatprep.subr.mxu0 0.0
    %467 = vmatpush1.msra.mxu0 0.0
    %468 = vmatprep.subr.mxu0 0.0
    %469 = vmatpush1.msra.mxu0 0.0
    %470 = vmatprep.subr.mxu0 0.0
    %471 = vmatpush1.msra.mxu0 0.0
    %472 = vmatprep.subr.mxu0 0.0
    %473 = vmatpush1.msra.mxu0 0.0
    %474 = vmatprep.subr.mxu0 0.0
    %475 = vmatpush1.msra.mxu0 0.0
    %476 = vmatprep.subr.mxu0 0.0
    %477 = vmatpush1.msra.mxu0 0.0
    %478 = vmatprep.subr.mxu0 0.0
    %479 = vmatpush1.msra.mxu0 0.0
    %480 = vmatprep.subr.mxu0 0.0
    %481 = vmatpush1.msra.mxu0 0.0
    %482 = vmatprep.subr.mxu0 0.0
    %483 = vmatpush1.msra.mxu0 0.0
    %484 = vmatprep.subr.mxu0 0.0
    %485 = vmatpush1.msra.mxu0 0.0
    %486 = vmatprep.subr.mxu0 0.0
    %487 = vmatpush1.msra.mxu0 0.0
    %488 = vmatprep.subr.mxu0 0.0
    %489 = vmatpush1.msra.mxu0 0.0
    %490 = vmatprep.mubr.f32.mxu0 0.0
    %491 = vmatmul.mubr.f32.gmra.mrb[0].mxu0 %v424
    %v492 = vpop.f32.mrb[0].mxu0
    %v493 = vadd.f32 %v86, %v492
    %v494 = vpop.f32.mrb[0].mxu0
    %495 = vdwg.mxu0
    %v496 = vtanh.pop %v493
    %v497 = vxor.u32 %v493, 2147483648
    %v498 = vmul.f32 %v497, 1.442695
    %v499 = vpow.pop %v498
    %v500 = vadd.f32 %v499, 1.0
    %v501 = vrcp.pop %v500
    %v502 = vmul.f32 1.0, %v501
    %v503 = vsel %vm92, %v496, %v502
    %v504 = vmul.f32 %v503, %v303
    %506 = vrot.lane.b32.xlu0 %v503, 64
    %v507 = vpop.permute.xlu0 %506
    %v509 = vmul.f32 %v503, %v507
    %511 = vrot.lane.b32.xlu0 %v509, 32
    %v512 = vpop.permute.xlu0 %511
    %v514 = vadd.f32 %v504, %v512
    %v515 = vtanh.pop %v514
    %517 = vrot.lane.b32.xlu0 %v515, 64
    %v518 = vpop.permute.xlu0 %517
    %v520 = vmul.f32 %v503, %v518
    %521 = vset.pattern.permute.xlu0 2
    %522 = vperm.xlu0 %521, %v59
    %v523 = vpop.permute.xlu0 %522
    %v525 = vmul.f32 %v523, %v102
    %v526 = vsel %vm105, %v416, 0
    %528 = vmatprep.subr.mxu0 0.0
    %529 = vmatpush1.msra.mxu0 %v61
    %530 = vmatprep.subr.mxu0 0.0
    %531 = vmatpush1.msra.mxu0 %v62
    %532 = vmatprep.subr.mxu0 0.0
    %533 = vmatpush1.msra.mxu0 %v63
    %534 = vmatprep.subr.mxu0 0.0
    %535 = vmatpush1.msra.mxu0 %v64
    %536 = vmatprep.subr.mxu0 0.0
    %537 = vmatpush1.msra.mxu0 0.0
    %538 = vmatprep.subr.mxu0 0.0
    %539 = vmatpush1.msra.mxu0 0.0
    %540 = vmatprep.subr.mxu0 0.0
    %541 = vmatpush1.msra.mxu0 0.0
    %542 = vmatprep.subr.mxu0 0.0
    %543 = vmatpush1.msra.mxu0 0.0
    %544 = vmatprep.subr.mxu0 0.0
    %545 = vmatpush1.msra.mxu0 0.0
    %546 = vmatprep.subr.mxu0 0.0
    %547 = vmatpush1.msra.mxu0 0.0
    %548 = vmatprep.subr.mxu0 0.0
    %549 = vmatpush1.msra.mxu0 0.0
    %550 = vmatprep.subr.mxu0 0.0
    %551 = vmatpush1.msra.mxu0 0.0
    %552 = vmatprep.subr.mxu0 0.0
    %553 = vmatpush1.msra.mxu0 0.0
    %554 = vmatprep.subr.mxu0 0.0
    %555 = vmatpush1.msra.mxu0 0.0
    %556 = vmatprep.subr.mxu0 0.0
    %557 = vmatpush1.msra.mxu0 0.0
    %558 = vmatprep.subr.mxu0 0.0
    %559 = vmatpush1.msra.mxu0 0.0
    %560 = vmatprep.subr.mxu0 0.0
    %561 = vmatpush1.msra.mxu0 0.0
    %562 = vmatprep.subr.mxu0 0.0
    %563 = vmatpush1.msra.mxu0 0.0
    %564 = vmatprep.subr.mxu0 0.0
    %565 = vmatpush1.msra.mxu0 0.0
    %566 = vmatprep.subr.mxu0 0.0
    %567 = vmatpush1.msra.mxu0 0.0
    %568 = vmatprep.subr.mxu0 0.0
    %569 = vmatpush1.msra.mxu0 0.0
    %570 = vmatprep.subr.mxu0 0.0
    %571 = vmatpush1.msra.mxu0 0.0
    %572 = vmatprep.subr.mxu0 0.0
    %573 = vmatpush1.msra.mxu0 0.0
    %574 = vmatprep.subr.mxu0 0.0
    %575 = vmatpush1.msra.mxu0 0.0
    %576 = vmatprep.subr.mxu0 0.0
    %577 = vmatpush1.msra.mxu0 0.0
    %578 = vmatprep.subr.mxu0 0.0
    %579 = vmatpush1.msra.mxu0 0.0
    %580 = vmatprep.subr.mxu0 0.0
    %581 = vmatpush1.msra.mxu0 0.0
    %582 = vmatprep.subr.mxu0 0.0
    %583 = vmatpush1.msra.mxu0 0.0
    %584 = vmatprep.subr.mxu0 0.0
    %585 = vmatpush1.msra.mxu0 0.0
    %586 = vmatprep.subr.mxu0 0.0
    %587 = vmatpush1.msra.mxu0 0.0
    %588 = vmatprep.subr.mxu0 0.0
    %589 = vmatpush1.msra.mxu0 0.0
    %590 = vmatprep.subr.mxu0 0.0
    %591 = vmatpush1.msra.mxu0 0.0
    %592 = vmatprep.mubr.f32.mxu0 0.0
    %593 = vmatmul.mubr.f32.gmra.mrb[0].mxu0 %v526
    %v594 = vpop.f32.mrb[0].mxu0
    %v595 = vadd.f32 0.0, %v594
    %v596 = vpop.f32.mrb[0].mxu0
    %597 = vdwg.mxu0
    %v598 = vadd.f32 %v525, %v595
    %v599 = vadd.f32 %v598, %v79
    %v600 = vtanh.pop %v599
    %v601 = vxor.u32 %v599, 2147483648
    %v602 = vmul.f32 %v601, 1.442695
    %v603 = vpow.pop %v602
    %v604 = vadd.f32 %v603, 1.0
    %v605 = vrcp.pop %v604
    %v606 = vmul.f32 1.0, %v605
    %v607 = vsel %vm92, %v600, %v606
    %v608 = vmul.f32 %v607, %v407
    %610 = vrot.lane.b32.xlu0 %v607, 64
    %v611 = vpop.permute.xlu0 %610
    %v613 = vmul.f32 %v607, %v611
    %615 = vrot.lane.b32.xlu0 %v613, 32
    %v616 = vpop.permute.xlu0 %615
    %v618 = vadd.f32 %v608, %v616
    %v619 = vtanh.pop %v618
    %621 = vrot.lane.b32.xlu0 %v619, 64
    %v622 = vpop.permute.xlu0 %621
    %v624 = vmul.f32 %v607, %v622
    %626 = vrot.lane.b32.xlu0 %v624, 32
    %v627 = vpop.permute.xlu0 %626
    %630 = vrot.lane.b32.xlu0 %v520, 64
    %v631 = vpop.permute.xlu0 %630
    %v633 = vsel %vm105, %v627, %v631
    %v635 = vsel %vm211, %v633, 0
    %637 = vmatprep.subr.mxu0 0.0
    %638 = vmatpush1.msra.mxu0 %v65
    %639 = vmatprep.subr.mxu0 0.0
    %640 = vmatpush1.msra.mxu0 %v66
    %641 = vmatprep.subr.mxu0 0.0
    %642 = vmatpush1.msra.mxu0 %v67
    %643 = vmatprep.subr.mxu0 0.0
    %644 = vmatpush1.msra.mxu0 %v68
    %645 = vmatprep.subr.mxu0 0.0
    %646 = vmatpush1.msra.mxu0 %v69
    %647 = vmatprep.subr.mxu0 0.0
    %648 = vmatpush1.msra.mxu0 %v70
    %649 = vmatprep.subr.mxu0 0.0
    %650 = vmatpush1.msra.mxu0 %v71
    %651 = vmatprep.subr.mxu0 0.0
    %652 = vmatpush1.msra.mxu0 %v72
    %653 = vmatprep.subr.mxu0 0.0
    %654 = vmatpush1.msra.mxu0 0.0
    %655 = vmatprep.subr.mxu0 0.0
    %656 = vmatpush1.msra.mxu0 0.0
    %657 = vmatprep.subr.mxu0 0.0
    %658 = vmatpush1.msra.mxu0 0.0
    %659 = vmatprep.subr.mxu0 0.0
    %660 = vmatpush1.msra.mxu0 0.0
    %661 = vmatprep.subr.mxu0 0.0
    %662 = vmatpush1.msra.mxu0 0.0
    %663 = vmatprep.subr.mxu0 0.0
    %664 = vmatpush1.msra.mxu0 0.0
    %665 = vmatprep.subr.mxu0 0.0
    %666 = vmatpush1.msra.mxu0 0.0
    %667 = vmatprep.subr.mxu0 0.0
    %668 = vmatpush1.msra.mxu0 0.0
    %669 = vmatprep.subr.mxu0 0.0
    %670 = vmatpush1.msra.mxu0 0.0
    %671 = vmatprep.subr.mxu0 0.0
    %672 = vmatpush1.msra.mxu0 0.0
    %673 = vmatprep.subr.mxu0 0.0
    %674 = vmatpush1.msra.mxu0 0.0
    %675 = vmatprep.subr.mxu0 0.0
    %676 = vmatpush1.msra.mxu0 0.0
    %677 = vmatprep.subr.mxu0 0.0
    %678 = vmatpush1.msra.mxu0 0.0
    %679 = vmatprep.subr.mxu0 0.0
    %680 = vmatpush1.msra.mxu0 0.0
    %681 = vmatprep.subr.mxu0 0.0
    %682 = vmatpush1.msra.mxu0 0.0
    %683 = vmatprep.subr.mxu0 0.0
    %684 = vmatpush1.msra.mxu0 0.0
    %685 = vmatprep.subr.mxu0 0.0
    %686 = vmatpush1.msra.mxu0 0.0
    %687 = vmatprep.subr.mxu0 0.0
    %688 = vmatpush1.msra.mxu0 0.0
    %689 = vmatprep.subr.mxu0 0.0
    %690 = vmatpush1.msra.mxu0 0.0
    %691 = vmatprep.subr.mxu0 0.0
    %692 = vmatpush1.msra.mxu0 0.0
    %693 = vmatprep.subr.mxu0 0.0
    %694 = vmatpush1.msra.mxu0 0.0
    %695 = vmatprep.subr.mxu0 0.0
    %696 = vmatpush1.msra.mxu0 0.0
    %697 = vmatprep.subr.mxu0 0.0
    %698 = vmatpush1.msra.mxu0 0.0
    %699 = vmatprep.subr.mxu0 0.0
    %700 = vmatpush1.msra.mxu0 0.0
    %701 = vmatprep.mubr.f32.mxu0 0.0
    %702 = vmatmul.mubr.f32.gmra.mrb[0].mxu0 %v635
    %v703 = vpop.f32.mrb[0].mxu0
    %v704 = vadd.f32 %v86, %v703
    %v705 = vpop.f32.mrb[0].mxu0
    %706 = vdwg.mxu0
    %v707 = vtanh.pop %v704
    %v708 = vxor.u32 %v704, 2147483648
    %v709 = vmul.f32 %v708, 1.442695
    %v710 = vpow.pop %v709
    %v711 = vadd.f32 %v710, 1.0
    %v712 = vrcp.pop %v711
    %v713 = vmul.f32 1.0, %v712
    %v714 = vsel %vm92, %v707, %v713
    %v715 = vmul.f32 %v714, %v514
    %717 = vrot.lane.b32.xlu0 %v714, 64
    %v718 = vpop.permute.xlu0 %717
    %v720 = vmul.f32 %v714, %v718
    %722 = vrot.lane.b32.xlu0 %v720, 32
    %v723 = vpop.permute.xlu0 %722
    %v725 = vadd.f32 %v715, %v723
    %v726 = vtanh.pop %v725
    %728 = vrot.lane.b32.xlu0 %v726, 64
    %v729 = vpop.permute.xlu0 %728
    %v731 = vmul.f32 %v714, %v729
    %732 = vset.pattern.permute.xlu0 3
    %733 = vperm.xlu0 %732, %v59
    %v734 = vpop.permute.xlu0 %733
    %v736 = vmul.f32 %v734, %v102
    %v737 = vsel %vm105, %v627, 0
    %739 = vmatprep.subr.mxu0 0.0
    %740 = vmatpush1.msra.mxu0 %v61
    %741 = vmatprep.subr.mxu0 0.0
    %742 = vmatpush1.msra.mxu0 %v62
    %743 = vmatprep.subr.mxu0 0.0
    %744 = vmatpush1.msra.mxu0 %v63
    %745 = vmatprep.subr.mxu0 0.0
    %746 = vmatpush1.msra.mxu0 %v64
    %747 = vmatprep.subr.mxu0 0.0
    %748 = vmatpush1.msra.mxu0 0.0
    %749 = vmatprep.subr.mxu0 0.0
    %750 = vmatpush1.msra.mxu0 0.0
    %751 = vmatprep.subr.mxu0 0.0
    %752 = vmatpush1.msra.mxu0 0.0
    %753 = vmatprep.subr.mxu0 0.0
    %754 = vmatpush1.msra.mxu0 0.0
    %755 = vmatprep.subr.mxu0 0.0
    %756 = vmatpush1.msra.mxu0 0.0
    %757 = vmatprep.subr.mxu0 0.0
    %758 = vmatpush1.msra.mxu0 0.0
    %759 = vmatprep.subr.mxu0 0.0
    %760 = vmatpush1.msra.mxu0 0.0
    %761 = vmatprep.subr.mxu0 0.0
    %762 = vmatpush1.msra.mxu0 0.0
    %763 = vmatprep.subr.mxu0 0.0
    %764 = vmatpush1.msra.mxu0 0.0
    %765 = vmatprep.subr.mxu0 0.0
    %766 = vmatpush1.msra.mxu0 0.0
    %767 = vmatprep.subr.mxu0 0.0
    %768 = vmatpush1.msra.mxu0 0.0
    %769 = vmatprep.subr.mxu0 0.0
    %770 = vmatpush1.msra.mxu0 0.0
    %771 = vmatprep.subr.mxu0 0.0
    %772 = vmatpush1.msra.mxu0 0.0
    %773 = vmatprep.subr.mxu0 0.0
    %774 = vmatpush1.msra.mxu0 0.0
    %775 = vmatprep.subr.mxu0 0.0
    %776 = vmatpush1.msra.mxu0 0.0
    %777 = vmatprep.subr.mxu0 0.0
    %778 = vmatpush1.msra.mxu0 0.0
    %779 = vmatprep.subr.mxu0 0.0
    %780 = vmatpush1.msra.mxu0 0.0
    %781 = vmatprep.subr.mxu0 0.0
    %782 = vmatpush1.msra.mxu0 0.0
    %783 = vmatprep.subr.mxu0 0.0
    %784 = vmatpush1.msra.mxu0 0.0
    %785 = vmatprep.subr.mxu0 0.0
    %786 = vmatpush1.msra.mxu0 0.0
    %787 = vmatprep.subr.mxu0 0.0
    %788 = vmatpush1.msra.mxu0 0.0
    %789 = vmatprep.subr.mxu0 0.0
    %790 = vmatpush1.msra.mxu0 0.0
    %791 = vmatprep.subr.mxu0 0.0
    %792 = vmatpush1.msra.mxu0 0.0
    %793 = vmatprep.subr.mxu0 0.0
    %794 = vmatpush1.msra.mxu0 0.0
    %795 = vmatprep.subr.mxu0 0.0
    %796 = vmatpush1.msra.mxu0 0.0
    %797 = vmatprep.subr.mxu0 0.0
    %798 = vmatpush1.msra.mxu0 0.0
    %799 = vmatprep.subr.mxu0 0.0
    %800 = vmatpush1.msra.mxu0 0.0
    %801 = vmatprep.subr.mxu0 0.0
    %802 = vmatpush1.msra.mxu0 0.0
    %803 = vmatprep.mubr.f32.mxu0 0.0
    %804 = vmatmul.mubr.f32.gmra.mrb[0].mxu0 %v737
    %v805 = vpop.f32.mrb[0].mxu0
    %v806 = vadd.f32 0.0, %v805
    %v807 = vpop.f32.mrb[0].mxu0
    %808 = vdwg.mxu0
    %v809 = vadd.f32 %v736, %v806
    %v810 = vadd.f32 %v809, %v79
    %v811 = vtanh.pop %v810
    %v812 = vxor.u32 %v810, 2147483648
    %v813 = vmul.f32 %v812, 1.442695
    %v814 = vpow.pop %v813
    %v815 = vadd.f32 %v814, 1.0
    %v816 = vrcp.pop %v815
    %v817 = vmul.f32 1.0, %v816
    %v818 = vsel %vm92, %v811, %v817
    %v819 = vmul.f32 %v818, %v618
    %821 = vrot.lane.b32.xlu0 %v818, 64
    %v822 = vpop.permute.xlu0 %821
    %v824 = vmul.f32 %v818, %v822
    %826 = vrot.lane.b32.xlu0 %v824, 32
    %v827 = vpop.permute.xlu0 %826
    %v829 = vadd.f32 %v819, %v827
    %v830 = vtanh.pop %v829
    %832 = vrot.lane.b32.xlu0 %v830, 64
    %v833 = vpop.permute.xlu0 %832
    %v835 = vmul.f32 %v818, %v833
    %837 = vrot.lane.b32.xlu0 %v835, 32
    %v838 = vpop.permute.xlu0 %837
    %841 = vrot.lane.b32.xlu0 %v731, 64
    %v842 = vpop.permute.xlu0 %841
    %v844 = vsel %vm105, %v838, %v842
    %v846 = vsel %vm211, %v844, 0
    %848 = vmatprep.subr.mxu0 0.0
    %849 = vmatpush1.msra.mxu0 %v65
    %850 = vmatprep.subr.mxu0 0.0
    %851 = vmatpush1.msra.mxu0 %v66
    %852 = vmatprep.subr.mxu0 0.0
    %853 = vmatpush1.msra.mxu0 %v67
    %854 = vmatprep.subr.mxu0 0.0
    %855 = vmatpush1.msra.mxu0 %v68
    %856 = vmatprep.subr.mxu0 0.0
    %857 = vmatpush1.msra.mxu0 %v69
    %858 = vmatprep.subr.mxu0 0.0
    %859 = vmatpush1.msra.mxu0 %v70
    %860 = vmatprep.subr.mxu0 0.0
    %861 = vmatpush1.msra.mxu0 %v71
    %862 = vmatprep.subr.mxu0 0.0
    %863 = vmatpush1.msra.mxu0 %v72
    %864 = vmatprep.subr.mxu0 0.0
    %865 = vmatpush1.msra.mxu0 0.0
    %866 = vmatprep.subr.mxu0 0.0
    %867 = vmatpush1.msra.mxu0 0.0
    %868 = vmatprep.subr.mxu0 0.0
    %869 = vmatpush1.msra.mxu0 0.0
    %870 = vmatprep.subr.mxu0 0.0
    %871 = vmatpush1.msra.mxu0 0.0
    %872 = vmatprep.subr.mxu0 0.0
    %873 = vmatpush1.msra.mxu0 0.0
    %874 = vmatprep.subr.mxu0 0.0
    %875 = vmatpush1.msra.mxu0 0.0
    %876 = vmatprep.subr.mxu0 0.0
    %877 = vmatpush1.msra.mxu0 0.0
    %878 = vmatprep.subr.mxu0 0.0
    %879 = vmatpush1.msra.mxu0 0.0
    %880 = vmatprep.subr.mxu0 0.0
    %881 = vmatpush1.msra.mxu0 0.0
    %882 = vmatprep.subr.mxu0 0.0
    %883 = vmatpush1.msra.mxu0 0.0
    %884 = vmatprep.subr.mxu0 0.0
    %885 = vmatpush1.msra.mxu0 0.0
    %886 = vmatprep.subr.mxu0 0.0
    %887 = vmatpush1.msra.mxu0 0.0
    %888 = vmatprep.subr.mxu0 0.0
    %889 = vmatpush1.msra.mxu0 0.0
    %890 = vmatprep.subr.mxu0 0.0
    %891 = vmatpush1.msra.mxu0 0.0
    %892 = vmatprep.subr.mxu0 0.0
    %893 = vmatpush1.msra.mxu0 0.0
    %894 = vmatprep.subr.mxu0 0.0
    %895 = vmatpush1.msra.mxu0 0.0
    %896 = vmatprep.subr.mxu0 0.0
    %897 = vmatpush1.msra.mxu0 0.0
    %898 = vmatprep.subr.mxu0 0.0
    %899 = vmatpush1.msra.mxu0 0.0
    %900 = vmatprep.subr.mxu0 0.0
    %901 = vmatpush1.msra.mxu0 0.0
    %902 = vmatprep.subr.mxu0 0.0
    %903 = vmatpush1.msra.mxu0 0.0
    %904 = vmatprep.subr.mxu0 0.0
    %905 = vmatpush1.msra.mxu0 0.0
    %906 = vmatprep.subr.mxu0 0.0
    %907 = vmatpush1.msra.mxu0 0.0
    %908 = vmatprep.subr.mxu0 0.0
    %909 = vmatpush1.msra.mxu0 0.0
    %910 = vmatprep.subr.mxu0 0.0
    %911 = vmatpush1.msra.mxu0 0.0
    %912 = vmatprep.mubr.f32.mxu0 0.0
    %913 = vmatmul.mubr.f32.gmra.mrb[0].mxu0 %v846
    %v914 = vpop.f32.mrb[0].mxu0
    %v915 = vadd.f32 %v86, %v914
    %v916 = vpop.f32.mrb[0].mxu0
    %917 = vdwg.mxu0
    %v918 = vtanh.pop %v915
    %v919 = vxor.u32 %v915, 2147483648
    %v920 = vmul.f32 %v919, 1.442695
    %v921 = vpow.pop %v920
    %v922 = vadd.f32 %v921, 1.0
    %v923 = vrcp.pop %v922
    %v924 = vmul.f32 1.0, %v923
    %v925 = vsel %vm92, %v918, %v924
    %v926 = vmul.f32 %v925, %v725
    %928 = vrot.lane.b32.xlu0 %v925, 64
    %v929 = vpop.permute.xlu0 %928
    %v931 = vmul.f32 %v925, %v929
    %933 = vrot.lane.b32.xlu0 %v931, 32
    %v934 = vpop.permute.xlu0 %933
    %v936 = vadd.f32 %v926, %v934
    %v937 = vtanh.pop %v936
    %939 = vrot.lane.b32.xlu0 %v937, 64
    %v940 = vpop.permute.xlu0 %939
    %v942 = vmul.f32 %v925, %v940
    %943 = vset.pattern.permute.xlu0 4
    %944 = vperm.xlu0 %943, %v59
    %v945 = vpop.permute.xlu0 %944
    %v947 = vmul.f32 %v945, %v102
    %v948 = vsel %vm105, %v838, 0
    %950 = vmatprep.subr.mxu0 0.0
    %951 = vmatpush1.msra.mxu0 %v61
    %952 = vmatprep.subr.mxu0 0.0
    %953 = vmatpush1.msra.mxu0 %v62
    %954 = vmatprep.subr.mxu0 0.0
    %955 = vmatpush1.msra.mxu0 %v63
    %956 = vmatprep.subr.mxu0 0.0
    %957 = vmatpush1.msra.mxu0 %v64
    %958 = vmatprep.subr.mxu0 0.0
    %959 = vmatpush1.msra.mxu0 0.0
    %960 = vmatprep.subr.mxu0 0.0
    %961 = vmatpush1.msra.mxu0 0.0
    %962 = vmatprep.subr.mxu0 0.0
    %963 = vmatpush1.msra.mxu0 0.0
    %964 = vmatprep.subr.mxu0 0.0
    %965 = vmatpush1.msra.mxu0 0.0
    %966 = vmatprep.subr.mxu0 0.0
    %967 = vmatpush1.msra.mxu0 0.0
    %968 = vmatprep.subr.mxu0 0.0
    %969 = vmatpush1.msra.mxu0 0.0
    %970 = vmatprep.subr.mxu0 0.0
    %971 = vmatpush1.msra.mxu0 0.0
    %972 = vmatprep.subr.mxu0 0.0
    %973 = vmatpush1.msra.mxu0 0.0
    %974 = vmatprep.subr.mxu0 0.0
    %975 = vmatpush1.msra.mxu0 0.0
    %976 = vmatprep.subr.mxu0 0.0
    %977 = vmatpush1.msra.mxu0 0.0
    %978 = vmatprep.subr.mxu0 0.0
    %979 = vmatpush1.msra.mxu0 0.0
    %980 = vmatprep.subr.mxu0 0.0
    %981 = vmatpush1.msra.mxu0 0.0
    %982 = vmatprep.subr.mxu0 0.0
    %983 = vmatpush1.msra.mxu0 0.0
    %984 = vmatprep.subr.mxu0 0.0
    %985 = vmatpush1.msra.mxu0 0.0
    %986 = vmatprep.subr.mxu0 0.0
    %987 = vmatpush1.msra.mxu0 0.0
    %988 = vmatprep.subr.mxu0 0.0
    %989 = vmatpush1.msra.mxu0 0.0
    %990 = vmatprep.subr.mxu0 0.0
    %991 = vmatpush1.msra.mxu0 0.0
    %992 = vmatprep.subr.mxu0 0.0
    %993 = vmatpush1.msra.mxu0 0.0
    %994 = vmatprep.subr.mxu0 0.0
    %995 = vmatpush1.msra.mxu0 0.0
    %996 = vmatprep.subr.mxu0 0.0
    %997 = vmatpush1.msra.mxu0 0.0
    %998 = vmatprep.subr.mxu0 0.0
    %999 = vmatpush1.msra.mxu0 0.0
    %1000 = vmatprep.subr.mxu0 0.0
    %1001 = vmatpush1.msra.mxu0 0.0
    %1002 = vmatprep.subr.mxu0 0.0
    %1003 = vmatpush1.msra.mxu0 0.0
    %1004 = vmatprep.subr.mxu0 0.0
    %1005 = vmatpush1.msra.mxu0 0.0
    %1006 = vmatprep.subr.mxu0 0.0
    %1007 = vmatpush1.msra.mxu0 0.0
    %1008 = vmatprep.subr.mxu0 0.0
    %1009 = vmatpush1.msra.mxu0 0.0
    %1010 = vmatprep.subr.mxu0 0.0
    %1011 = vmatpush1.msra.mxu0 0.0
    %1012 = vmatprep.subr.mxu0 0.0
    %1013 = vmatpush1.msra.mxu0 0.0
    %1014 = vmatprep.mubr.f32.mxu0 0.0
    %1015 = vmatmul.mubr.f32.gmra.mrb[0].mxu0 %v948
    %v1016 = vpop.f32.mrb[0].mxu0
    %v1017 = vadd.f32 0.0, %v1016
    %v1018 = vpop.f32.mrb[0].mxu0
    %1019 = vdwg.mxu0
    %v1020 = vadd.f32 %v947, %v1017
    %v1021 = vadd.f32 %v1020, %v79
    %v1022 = vtanh.pop %v1021
    %v1023 = vxor.u32 %v1021, 2147483648
    %v1024 = vmul.f32 %v1023, 1.442695
    %v1025 = vpow.pop %v1024
    %v1026 = vadd.f32 %v1025, 1.0
    %v1027 = vrcp.pop %v1026
    %v1028 = vmul.f32 1.0, %v1027
    %v1029 = vsel %vm92, %v1022, %v1028
    %v1030 = vmul.f32 %v1029, %v829
    %1032 = vrot.lane.b32.xlu0 %v1029, 64
    %v1033 = vpop.permute.xlu0 %1032
    %v1035 = vmul.f32 %v1029, %v1033
    %1037 = vrot.lane.b32.xlu0 %v1035, 32
    %v1038 = vpop.permute.xlu0 %1037
    %v1040 = vadd.f32 %v1030, %v1038
    %v1041 = vtanh.pop %v1040
    %1043 = vrot.lane.b32.xlu0 %v1041, 64
    %v1044 = vpop.permute.xlu0 %1043
    %v1046 = vmul.f32 %v1029, %v1044
    %1048 = vrot.lane.b32.xlu0 %v1046, 32
    %v1049 = vpop.permute.xlu0 %1048
    %1052 = vrot.lane.b32.xlu0 %v942, 64
    %v1053 = vpop.permute.xlu0 %1052
    %v1055 = vsel %vm105, %v1049, %v1053
    %v1057 = vsel %vm211, %v1055, 0
    %1059 = vmatprep.subr.mxu0 0.0
    %1060 = vmatpush1.msra.mxu0 %v65
    %1061 = vmatprep.subr.mxu0 0.0
    %1062 = vmatpush1.msra.mxu0 %v66
    %1063 = vmatprep.subr.mxu0 0.0
    %1064 = vmatpush1.msra.mxu0 %v67
    %1065 = vmatprep.subr.mxu0 0.0
    %1066 = vmatpush1.msra.mxu0 %v68
    %1067 = vmatprep.subr.mxu0 0.0
    %1068 = vmatpush1.msra.mxu0 %v69
    %1069 = vmatprep.subr.mxu0 0.0
    %1070 = vmatpush1.msra.mxu0 %v70
    %1071 = vmatprep.subr.mxu0 0.0
    %1072 = vmatpush1.msra.mxu0 %v71
    %1073 = vmatprep.subr.mxu0 0.0
    %1074 = vmatpush1.msra.mxu0 %v72
    %1075 = vmatprep.subr.mxu0 0.0
    %1076 = vmatpush1.msra.mxu0 0.0
    %1077 = vmatprep.subr.mxu0 0.0
    %1078 = vmatpush1.msra.mxu0 0.0
    %1079 = vmatprep.subr.mxu0 0.0
    %1080 = vmatpush1.msra.mxu0 0.0
    %1081 = vmatprep.subr.mxu0 0.0
    %1082 = vmatpush1.msra.mxu0 0.0
    %1083 = vmatprep.subr.mxu0 0.0
    %1084 = vmatpush1.msra.mxu0 0.0
    %1085 = vmatprep.subr.mxu0 0.0
    %1086 = vmatpush1.msra.mxu0 0.0
    %1087 = vmatprep.subr.mxu0 0.0
    %1088 = vmatpush1.msra.mxu0 0.0
    %1089 = vmatprep.subr.mxu0 0.0
    %1090 = vmatpush1.msra.mxu0 0.0
    %1091 = vmatprep.subr.mxu0 0.0
    %1092 = vmatpush1.msra.mxu0 0.0
    %1093 = vmatprep.subr.mxu0 0.0
    %1094 = vmatpush1.msra.mxu0 0.0
    %1095 = vmatprep.subr.mxu0 0.0
    %1096 = vmatpush1.msra.mxu0 0.0
    %1097 = vmatprep.subr.mxu0 0.0
    %1098 = vmatpush1.msra.mxu0 0.0
    %1099 = vmatprep.subr.mxu0 0.0
    %1100 = vmatpush1.msra.mxu0 0.0
    %1101 = vmatprep.subr.mxu0 0.0
    %1102 = vmatpush1.msra.mxu0 0.0
    %1103 = vmatprep.subr.mxu0 0.0
    %1104 = vmatpush1.msra.mxu0 0.0
    %1105 = vmatprep.subr.mxu0 0.0
    %1106 = vmatpush1.msra.mxu0 0.0
    %1107 = vmatprep.subr.mxu0 0.0
    %1108 = vmatpush1.msra.mxu0 0.0
    %1109 = vmatprep.subr.mxu0 0.0
    %1110 = vmatpush1.msra.mxu0 0.0
    %1111 = vmatprep.subr.mxu0 0.0
    %1112 = vmatpush1.msra.mxu0 0.0
    %1113 = vmatprep.subr.mxu0 0.0
    %1114 = vmatpush1.msra.mxu0 0.0
    %1115 = vmatprep.subr.mxu0 0.0
    %1116 = vmatpush1.msra.mxu0 0.0
    %1117 = vmatprep.subr.mxu0 0.0
    %1118 = vmatpush1.msra.mxu0 0.0
    %1119 = vmatprep.subr.mxu0 0.0
    %1120 = vmatpush1.msra.mxu0 0.0
    %1121 = vmatprep.subr.mxu0 0.0
    %1122 = vmatpush1.msra.mxu0 0.0
    %1123 = vmatprep.mubr.f32.mxu0 0.0
    %1124 = vmatmul.mubr.f32.gmra.mrb[0].mxu0 %v1057
    %v1125 = vpop.f32.mrb[0].mxu0
    %v1126 = vadd.f32 %v86, %v1125
    %v1127 = vpop.f32.mrb[0].mxu0
    %1128 = vdwg.mxu0
    %v1129 = vtanh.pop %v1126
    %v1130 = vxor.u32 %v1126, 2147483648
    %v1131 = vmul.f32 %v1130, 1.442695
    %v1132 = vpow.pop %v1131
    %v1133 = vadd.f32 %v1132, 1.0
    %v1134 = vrcp.pop %v1133
    %v1135 = vmul.f32 1.0, %v1134
    %v1136 = vsel %vm92, %v1129, %v1135
    %v1137 = vmul.f32 %v1136, %v936
    %1139 = vrot.lane.b32.xlu0 %v1136, 64
    %v1140 = vpop.permute.xlu0 %1139
    %v1142 = vmul.f32 %v1136, %v1140
    %1144 = vrot.lane.b32.xlu0 %v1142, 32
    %v1145 = vpop.permute.xlu0 %1144
    %v1147 = vadd.f32 %v1137, %v1145
    %v1148 = vtanh.pop %v1147
    %1150 = vrot.lane.b32.xlu0 %v1148, 64
    %v1151 = vpop.permute.xlu0 %1150
    %v1153 = vmul.f32 %v1136, %v1151
    %1154 = vset.pattern.permute.xlu0 5
    %1155 = vperm.xlu0 %1154, %v59
    %v1156 = vpop.permute.xlu0 %1155
    %v1158 = vmul.f32 %v1156, %v102
    %v1159 = vsel %vm105, %v1049, 0
    %1161 = vmatprep.subr.mxu0 0.0
    %1162 = vmatpush1.msra.mxu0 %v61
    %1163 = vmatprep.subr.mxu0 0.0
    %1164 = vmatpush1.msra.mxu0 %v62
    %1165 = vmatprep.subr.mxu0 0.0
    %1166 = vmatpush1.msra.mxu0 %v63
    %1167 = vmatprep.subr.mxu0 0.0
    %1168 = vmatpush1.msra.mxu0 %v64
    %1169 = vmatprep.subr.mxu0 0.0
    %1170 = vmatpush1.msra.mxu0 0.0
    %1171 = vmatprep.subr.mxu0 0.0
    %1172 = vmatpush1.msra.mxu0 0.0
    %1173 = vmatprep.subr.mxu0 0.0
    %1174 = vmatpush1.msra.mxu0 0.0
    %1175 = vmatprep.subr.mxu0 0.0
    %1176 = vmatpush1.msra.mxu0 0.0
    %1177 = vmatprep.subr.mxu0 0.0
    %1178 = vmatpush1.msra.mxu0 0.0
    %1179 = vmatprep.subr.mxu0 0.0
    %1180 = vmatpush1.msra.mxu0 0.0
    %1181 = vmatprep.subr.mxu0 0.0
    %1182 = vmatpush1.msra.mxu0 0.0
    %1183 = vmatprep.subr.mxu0 0.0
    %1184 = vmatpush1.msra.mxu0 0.0
    %1185 = vmatprep.subr.mxu0 0.0
    %1186 = vmatpush1.msra.mxu0 0.0
    %1187 = vmatprep.subr.mxu0 0.0
    %1188 = vmatpush1.msra.mxu0 0.0
    %1189 = vmatprep.subr.mxu0 0.0
    %1190 = vmatpush1.msra.mxu0 0.0
    %1191 = vmatprep.subr.mxu0 0.0
    %1192 = vmatpush1.msra.mxu0 0.0
    %1193 = vmatprep.subr.mxu0 0.0
    %1194 = vmatpush1.msra.mxu0 0.0
    %1195 = vmatprep.subr.mxu0 0.0
    %1196 = vmatpush1.msra.mxu0 0.0
    %1197 = vmatprep.subr.mxu0 0.0
    %1198 = vmatpush1.msra.mxu0 0.0
    %1199 = vmatprep.subr.mxu0 0.0
    %1200 = vmatpush1.msra.mxu0 0.0
    %1201 = vmatprep.subr.mxu0 0.0
    %1202 = vmatpush1.msra.mxu0 0.0
    %1203 = vmatprep.subr.mxu0 0.0
    %1204 = vmatpush1.msra.mxu0 0.0
    %1205 = vmatprep.subr.mxu0 0.0
    %1206 = vmatpush1.msra.mxu0 0.0
    %1207 = vmatprep.subr.mxu0 0.0
    %1208 = vmatpush1.msra.mxu0 0.0
    %1209 = vmatprep.subr.mxu0 0.0
    %1210 = vmatpush1.msra.mxu0 0.0
    %1211 = vmatprep.subr.mxu0 0.0
    %1212 = vmatpush1.msra.mxu0 0.0
    %1213 = vmatprep.subr.mxu0 0.0
    %1214 = vmatpush1.msra.mxu0 0.0
    %1215 = vmatprep.subr.mxu0 0.0
    %1216 = vmatpush1.msra.mxu0 0.0
    %1217 = vmatprep.subr.mxu0 0.0
    %1218 = vmatpush1.msra.mxu0 0.0
    %1219 = vmatprep.subr.mxu0 0.0
    %1220 = vmatpush1.msra.mxu0 0.0
    %1221 = vmatprep.subr.mxu0 0.0
    %1222 = vmatpush1.msra.mxu0 0.0
    %1223 = vmatprep.subr.mxu0 0.0
    %1224 = vmatpush1.msra.mxu0 0.0
    %1225 = vmatprep.mubr.f32.mxu0 0.0
    %1226 = vmatmul.mubr.f32.gmra.mrb[0].mxu0 %v1159
    %v1227 = vpop.f32.mrb[0].mxu0
    %v1228 = vadd.f32 0.0, %v1227
    %v1229 = vpop.f32.mrb[0].mxu0
    %1230 = vdwg.mxu0
    %v1231 = vadd.f32 %v1158, %v1228
    %v1232 = vadd.f32 %v1231, %v79
    %v1233 = vtanh.pop %v1232
    %v1234 = vxor.u32 %v1232, 2147483648
    %v1235 = vmul.f32 %v1234, 1.442695
    %v1236 = vpow.pop %v1235
    %v1237 = vadd.f32 %v1236, 1.0
    %v1238 = vrcp.pop %v1237
    %v1239 = vmul.f32 1.0, %v1238
    %v1240 = vsel %vm92, %v1233, %v1239
    %v1241 = vmul.f32 %v1240, %v1040
    %1243 = vrot.lane.b32.xlu0 %v1240, 64
    %v1244 = vpop.permute.xlu0 %1243
    %v1246 = vmul.f32 %v1240, %v1244
    %1248 = vrot.lane.b32.xlu0 %v1246, 32
    %v1249 = vpop.permute.xlu0 %1248
    %v1251 = vadd.f32 %v1241, %v1249
    %v1252 = vtanh.pop %v1251
    %1254 = vrot.lane.b32.xlu0 %v1252, 64
    %v1255 = vpop.permute.xlu0 %1254
    %v1257 = vmul.f32 %v1240, %v1255
    %1259 = vrot.lane.b32.xlu0 %v1257, 32
    %v1260 = vpop.permute.xlu0 %1259
    %1263 = vrot.lane.b32.xlu0 %v1153, 64
    %v1264 = vpop.permute.xlu0 %1263
    %v1266 = vsel %vm105, %v1260, %v1264
    %v1268 = vsel %vm211, %v1266, 0
    %1270 = vmatprep.subr.mxu0 0.0
    %1271 = vmatpush1.msra.mxu0 %v65
    %1272 = vmatprep.subr.mxu0 0.0
    %1273 = vmatpush1.msra.mxu0 %v66
    %1274 = vmatprep.subr.mxu0 0.0
    %1275 = vmatpush1.msra.mxu0 %v67
    %1276 = vmatprep.subr.mxu0 0.0
    %1277 = vmatpush1.msra.mxu0 %v68
    %1278 = vmatprep.subr.mxu0 0.0
    %1279 = vmatpush1.msra.mxu0 %v69
    %1280 = vmatprep.subr.mxu0 0.0
    %1281 = vmatpush1.msra.mxu0 %v70
    %1282 = vmatprep.subr.mxu0 0.0
    %1283 = vmatpush1.msra.mxu0 %v71
    %1284 = vmatprep.subr.mxu0 0.0
    %1285 = vmatpush1.msra.mxu0 %v72
    %1286 = vmatprep.subr.mxu0 0.0
    %1287 = vmatpush1.msra.mxu0 0.0
    %1288 = vmatprep.subr.mxu0 0.0
    %1289 = vmatpush1.msra.mxu0 0.0
    %1290 = vmatprep.subr.mxu0 0.0
    %1291 = vmatpush1.msra.mxu0 0.0
    %1292 = vmatprep.subr.mxu0 0.0
    %1293 = vmatpush1.msra.mxu0 0.0
    %1294 = vmatprep.subr.mxu0 0.0
    %1295 = vmatpush1.msra.mxu0 0.0
    %1296 = vmatprep.subr.mxu0 0.0
    %1297 = vmatpush1.msra.mxu0 0.0
    %1298 = vmatprep.subr.mxu0 0.0
    %1299 = vmatpush1.msra.mxu0 0.0
    %1300 = vmatprep.subr.mxu0 0.0
    %1301 = vmatpush1.msra.mxu0 0.0
    %1302 = vmatprep.subr.mxu0 0.0
    %1303 = vmatpush1.msra.mxu0 0.0
    %1304 = vmatprep.subr.mxu0 0.0
    %1305 = vmatpush1.msra.mxu0 0.0
    %1306 = vmatprep.subr.mxu0 0.0
    %1307 = vmatpush1.msra.mxu0 0.0
    %1308 = vmatprep.subr.mxu0 0.0
    %1309 = vmatpush1.msra.mxu0 0.0
    %1310 = vmatprep.subr.mxu0 0.0
    %1311 = vmatpush1.msra.mxu0 0.0
    %1312 = vmatprep.subr.mxu0 0.0
    %1313 = vmatpush1.msra.mxu0 0.0
    %1314 = vmatprep.subr.mxu0 0.0
    %1315 = vmatpush1.msra.mxu0 0.0
    %1316 = vmatprep.subr.mxu0 0.0
    %1317 = vmatpush1.msra.mxu0 0.0
    %1318 = vmatprep.subr.mxu0 0.0
    %1319 = vmatpush1.msra.mxu0 0.0
    %1320 = vmatprep.subr.mxu0 0.0
    %1321 = vmatpush1.msra.mxu0 0.0
    %1322 = vmatprep.subr.mxu0 0.0
    %1323 = vmatpush1.msra.mxu0 0.0
    %1324 = vmatprep.subr.mxu0 0.0
    %1325 = vmatpush1.msra.mxu0 0.0
    %1326 = vmatprep.subr.mxu0 0.0
    %1327 = vmatpush1.msra.mxu0 0.0
    %1328 = vmatprep.subr.mxu0 0.0
    %1329 = vmatpush1.msra.mxu0 0.0
    %1330 = vmatprep.subr.mxu0 0.0
    %1331 = vmatpush1.msra.mxu0 0.0
    %1332 = vmatprep.subr.mxu0 0.0
    %1333 = vmatpush1.msra.mxu0 0.0
    %1334 = vmatprep.mubr.f32.mxu0 0.0
    %1335 = vmatmul.mubr.f32.gmra.mrb[0].mxu0 %v1268
    %v1336 = vpop.f32.mrb[0].mxu0
    %v1337 = vadd.f32 %v86, %v1336
    %v1338 = vpop.f32.mrb[0].mxu0
    %1339 = vdwg.mxu0
    %v1340 = vtanh.pop %v1337
    %v1341 = vxor.u32 %v1337, 2147483648
    %v1342 = vmul.f32 %v1341, 1.442695
    %v1343 = vpow.pop %v1342
    %v1344 = vadd.f32 %v1343, 1.0
    %v1345 = vrcp.pop %v1344
    %v1346 = vmul.f32 1.0, %v1345
    %v1347 = vsel %vm92, %v1340, %v1346
    %v1348 = vmul.f32 %v1347, %v1147
    %1350 = vrot.lane.b32.xlu0 %v1347, 64
    %v1351 = vpop.permute.xlu0 %1350
    %v1353 = vmul.f32 %v1347, %v1351
    %1355 = vrot.lane.b32.xlu0 %v1353, 32
    %v1356 = vpop.permute.xlu0 %1355
    %v1358 = vadd.f32 %v1348, %v1356
    %v1359 = vtanh.pop %v1358
    %1361 = vrot.lane.b32.xlu0 %v1359, 64
    %v1362 = vpop.permute.xlu0 %1361
    %v1364 = vmul.f32 %v1347, %v1362
    %1365 = vset.pattern.permute.xlu0 6
    %1366 = vperm.xlu0 %1365, %v59
    %v1367 = vpop.permute.xlu0 %1366
    %v1369 = vmul.f32 %v1367, %v102
    %v1370 = vsel %vm105, %v1260, 0
    %1372 = vmatprep.subr.mxu0 0.0
    %1373 = vmatpush1.msra.mxu0 %v61
    %1374 = vmatprep.subr.mxu0 0.0
    %1375 = vmatpush1.msra.mxu0 %v62
    %1376 = vmatprep.subr.mxu0 0.0
    %1377 = vmatpush1.msra.mxu0 %v63
    %1378 = vmatprep.subr.mxu0 0.0
    %1379 = vmatpush1.msra.mxu0 %v64
    %1380 = vmatprep.subr.mxu0 0.0
    %1381 = vmatpush1.msra.mxu0 0.0
    %1382 = vmatprep.subr.mxu0 0.0
    %1383 = vmatpush1.msra.mxu0 0.0
    %1384 = vmatprep.subr.mxu0 0.0
    %1385 = vmatpush1.msra.mxu0 0.0
    %1386 = vmatprep.subr.mxu0 0.0
    %1387 = vmatpush1.msra.mxu0 0.0
    %1388 = vmatprep.subr.mxu0 0.0
    %1389 = vmatpush1.msra.mxu0 0.0
    %1390 = vmatprep.subr.mxu0 0.0
    %1391 = vmatpush1.msra.mxu0 0.0
    %1392 = vmatprep.subr.mxu0 0.0
    %1393 = vmatpush1.msra.mxu0 0.0
    %1394 = vmatprep.subr.mxu0 0.0
    %1395 = vmatpush1.msra.mxu0 0.0
    %1396 = vmatprep.subr.mxu0 0.0
    %1397 = vmatpush1.msra.mxu0 0.0
    %1398 = vmatprep.subr.mxu0 0.0
    %1399 = vmatpush1.msra.mxu0 0.0
    %1400 = vmatprep.subr.mxu0 0.0
    %1401 = vmatpush1.msra.mxu0 0.0
    %1402 = vmatprep.subr.mxu0 0.0
    %1403 = vmatpush1.msra.mxu0 0.0
    %1404 = vmatprep.subr.mxu0 0.0
    %1405 = vmatpush1.msra.mxu0 0.0
    %1406 = vmatprep.subr.mxu0 0.0
    %1407 = vmatpush1.msra.mxu0 0.0
    %1408 = vmatprep.subr.mxu0 0.0
    %1409 = vmatpush1.msra.mxu0 0.0
    %1410 = vmatprep.subr.mxu0 0.0
    %1411 = vmatpush1.msra.mxu0 0.0
    %1412 = vmatprep.subr.mxu0 0.0
    %1413 = vmatpush1.msra.mxu0 0.0
    %1414 = vmatprep.subr.mxu0 0.0
    %1415 = vmatpush1.msra.mxu0 0.0
    %1416 = vmatprep.subr.mxu0 0.0
    %1417 = vmatpush1.msra.mxu0 0.0
    %1418 = vmatprep.subr.mxu0 0.0
    %1419 = vmatpush1.msra.mxu0 0.0
    %1420 = vmatprep.subr.mxu0 0.0
    %1421 = vmatpush1.msra.mxu0 0.0
    %1422 = vmatprep.subr.mxu0 0.0
    %1423 = vmatpush1.msra.mxu0 0.0
    %1424 = vmatprep.subr.mxu0 0.0
    %1425 = vmatpush1.msra.mxu0 0.0
    %1426 = vmatprep.subr.mxu0 0.0
    %1427 = vmatpush1.msra.mxu0 0.0
    %1428 = vmatprep.subr.mxu0 0.0
    %1429 = vmatpush1.msra.mxu0 0.0
    %1430 = vmatprep.subr.mxu0 0.0
    %1431 = vmatpush1.msra.mxu0 0.0
    %1432 = vmatprep.subr.mxu0 0.0
    %1433 = vmatpush1.msra.mxu0 0.0
    %1434 = vmatprep.subr.mxu0 0.0
    %1435 = vmatpush1.msra.mxu0 0.0
    %1436 = vmatprep.mubr.f32.mxu0 0.0
    %1437 = vmatmul.mubr.f32.gmra.mrb[0].mxu0 %v1370
    %v1438 = vpop.f32.mrb[0].mxu0
    %v1439 = vadd.f32 0.0, %v1438
    %v1440 = vpop.f32.mrb[0].mxu0
    %1441 = vdwg.mxu0
    %v1442 = vadd.f32 %v1369, %v1439
    %v1443 = vadd.f32 %v1442, %v79
    %v1444 = vtanh.pop %v1443
    %v1445 = vxor.u32 %v1443, 2147483648
    %v1446 = vmul.f32 %v1445, 1.442695
    %v1447 = vpow.pop %v1446
    %v1448 = vadd.f32 %v1447, 1.0
    %v1449 = vrcp.pop %v1448
    %v1450 = vmul.f32 1.0, %v1449
    %v1451 = vsel %vm92, %v1444, %v1450
    %v1452 = vmul.f32 %v1451, %v1251
    %1454 = vrot.lane.b32.xlu0 %v1451, 64
    %v1455 = vpop.permute.xlu0 %1454
    %v1457 = vmul.f32 %v1451, %v1455
    %1459 = vrot.lane.b32.xlu0 %v1457, 32
    %v1460 = vpop.permute.xlu0 %1459
    %v1462 = vadd.f32 %v1452, %v1460
    %v1463 = vtanh.pop %v1462
    %1465 = vrot.lane.b32.xlu0 %v1463, 64
    %v1466 = vpop.permute.xlu0 %1465
    %v1468 = vmul.f32 %v1451, %v1466
    %1470 = vrot.lane.b32.xlu0 %v1468, 32
    %v1471 = vpop.permute.xlu0 %1470
    %1474 = vrot.lane.b32.xlu0 %v1364, 64
    %v1475 = vpop.permute.xlu0 %1474
    %v1477 = vsel %vm105, %v1471, %v1475
    %v1479 = vsel %vm211, %v1477, 0
    %1481 = vmatprep.subr.mxu0 0.0
    %1482 = vmatpush1.msra.mxu0 %v65
    %1483 = vmatprep.subr.mxu0 0.0
    %1484 = vmatpush1.msra.mxu0 %v66
    %1485 = vmatprep.subr.mxu0 0.0
    %1486 = vmatpush1.msra.mxu0 %v67
    %1487 = vmatprep.subr.mxu0 0.0
    %1488 = vmatpush1.msra.mxu0 %v68
    %1489 = vmatprep.subr.mxu0 0.0
    %1490 = vmatpush1.msra.mxu0 %v69
    %1491 = vmatprep.subr.mxu0 0.0
    %1492 = vmatpush1.msra.mxu0 %v70
    %1493 = vmatprep.subr.mxu0 0.0
    %1494 = vmatpush1.msra.mxu0 %v71
    %1495 = vmatprep.subr.mxu0 0.0
    %1496 = vmatpush1.msra.mxu0 %v72
    %1497 = vmatprep.subr.mxu0 0.0
    %1498 = vmatpush1.msra.mxu0 0.0
    %1499 = vmatprep.subr.mxu0 0.0
    %1500 = vmatpush1.msra.mxu0 0.0
    %1501 = vmatprep.subr.mxu0 0.0
    %1502 = vmatpush1.msra.mxu0 0.0
    %1503 = vmatprep.subr.mxu0 0.0
    %1504 = vmatpush1.msra.mxu0 0.0
    %1505 = vmatprep.subr.mxu0 0.0
    %1506 = vmatpush1.msra.mxu0 0.0
    %1507 = vmatprep.subr.mxu0 0.0
    %1508 = vmatpush1.msra.mxu0 0.0
    %1509 = vmatprep.subr.mxu0 0.0
    %1510 = vmatpush1.msra.mxu0 0.0
    %1511 = vmatprep.subr.mxu0 0.0
    %1512 = vmatpush1.msra.mxu0 0.0
    %1513 = vmatprep.subr.mxu0 0.0
    %1514 = vmatpush1.msra.mxu0 0.0
    %1515 = vmatprep.subr.mxu0 0.0
    %1516 = vmatpush1.msra.mxu0 0.0
    %1517 = vmatprep.subr.mxu0 0.0
    %1518 = vmatpush1.msra.mxu0 0.0
    %1519 = vmatprep.subr.mxu0 0.0
    %1520 = vmatpush1.msra.mxu0 0.0
    %1521 = vmatprep.subr.mxu0 0.0
    %1522 = vmatpush1.msra.mxu0 0.0
    %1523 = vmatprep.subr.mxu0 0.0
    %1524 = vmatpush1.msra.mxu0 0.0
    %1525 = vmatprep.subr.mxu0 0.0
    %1526 = vmatpush1.msra.mxu0 0.0
    %1527 = vmatprep.subr.mxu0 0.0
    %1528 = vmatpush1.msra.mxu0 0.0
    %1529 = vmatprep.subr.mxu0 0.0
    %1530 = vmatpush1.msra.mxu0 0.0
    %1531 = vmatprep.subr.mxu0 0.0
    %1532 = vmatpush1.msra.mxu0 0.0
    %1533 = vmatprep.subr.mxu0 0.0
    %1534 = vmatpush1.msra.mxu0 0.0
    %1535 = vmatprep.subr.mxu0 0.0
    %1536 = vmatpush1.msra.mxu0 0.0
    %1537 = vmatprep.subr.mxu0 0.0
    %1538 = vmatpush1.msra.mxu0 0.0
    %1539 = vmatprep.subr.mxu0 0.0
    %1540 = vmatpush1.msra.mxu0 0.0
    %1541 = vmatprep.subr.mxu0 0.0
    %1542 = vmatpush1.msra.mxu0 0.0
    %1543 = vmatprep.subr.mxu0 0.0
    %1544 = vmatpush1.msra.mxu0 0.0
    %1545 = vmatprep.mubr.f32.mxu0 0.0
    %1546 = vmatmul.mubr.f32.gmra.mrb[0].mxu0 %v1479
    %v1547 = vpop.f32.mrb[0].mxu0
    %v1548 = vadd.f32 %v86, %v1547
    %v1549 = vpop.f32.mrb[0].mxu0
    %1550 = vdwg.mxu0
    %v1551 = vtanh.pop %v1548
    %v1552 = vxor.u32 %v1548, 2147483648
    %v1553 = vmul.f32 %v1552, 1.442695
    %v1554 = vpow.pop %v1553
    %v1555 = vadd.f32 %v1554, 1.0
    %v1556 = vrcp.pop %v1555
    %v1557 = vmul.f32 1.0, %v1556
    %v1558 = vsel %vm92, %v1551, %v1557
    %v1559 = vmul.f32 %v1558, %v1358
    %1561 = vrot.lane.b32.xlu0 %v1558, 64
    %v1562 = vpop.permute.xlu0 %1561
    %v1564 = vmul.f32 %v1558, %v1562
    %1566 = vrot.lane.b32.xlu0 %v1564, 32
    %v1567 = vpop.permute.xlu0 %1566
    %v1569 = vadd.f32 %v1559, %v1567
    %v1570 = vtanh.pop %v1569
    %1572 = vrot.lane.b32.xlu0 %v1570, 64
    %v1573 = vpop.permute.xlu0 %1572
    %v1575 = vmul.f32 %v1558, %v1573
    %1576 = vset.pattern.permute.xlu0 7
    %1577 = vperm.xlu0 %1576, %v59
    %v1578 = vpop.permute.xlu0 %1577
    %v1580 = vmul.f32 %v1578, %v102
    %v1581 = vsel %vm105, %v1471, 0
    %1583 = vmatprep.subr.mxu0 0.0
    %1584 = vmatpush1.msra.mxu0 %v61
    %1585 = vmatprep.subr.mxu0 0.0
    %1586 = vmatpush1.msra.mxu0 %v62
    %1587 = vmatprep.subr.mxu0 0.0
    %1588 = vmatpush1.msra.mxu0 %v63
    %1589 = vmatprep.subr.mxu0 0.0
    %1590 = vmatpush1.msra.mxu0 %v64
    %1591 = vmatprep.subr.mxu0 0.0
    %1592 = vmatpush1.msra.mxu0 0.0
    %1593 = vmatprep.subr.mxu0 0.0
    %1594 = vmatpush1.msra.mxu0 0.0
    %1595 = vmatprep.subr.mxu0 0.0
    %1596 = vmatpush1.msra.mxu0 0.0
    %1597 = vmatprep.subr.mxu0 0.0
    %1598 = vmatpush1.msra.mxu0 0.0
    %1599 = vmatprep.subr.mxu0 0.0
    %1600 = vmatpush1.msra.mxu0 0.0
    %1601 = vmatprep.subr.mxu0 0.0
    %1602 = vmatpush1.msra.mxu0 0.0
    %1603 = vmatprep.subr.mxu0 0.0
    %1604 = vmatpush1.msra.mxu0 0.0
    %1605 = vmatprep.subr.mxu0 0.0
    %1606 = vmatpush1.msra.mxu0 0.0
    %1607 = vmatprep.subr.mxu0 0.0
    %1608 = vmatpush1.msra.mxu0 0.0
    %1609 = vmatprep.subr.mxu0 0.0
    %1610 = vmatpush1.msra.mxu0 0.0
    %1611 = vmatprep.subr.mxu0 0.0
    %1612 = vmatpush1.msra.mxu0 0.0
    %1613 = vmatprep.subr.mxu0 0.0
    %1614 = vmatpush1.msra.mxu0 0.0
    %1615 = vmatprep.subr.mxu0 0.0
    %1616 = vmatpush1.msra.mxu0 0.0
    %1617 = vmatprep.subr.mxu0 0.0
    %1618 = vmatpush1.msra.mxu0 0.0
    %1619 = vmatprep.subr.mxu0 0.0
    %1620 = vmatpush1.msra.mxu0 0.0
    %1621 = vmatprep.subr.mxu0 0.0
    %1622 = vmatpush1.msra.mxu0 0.0
    %1623 = vmatprep.subr.mxu0 0.0
    %1624 = vmatpush1.msra.mxu0 0.0
    %1625 = vmatprep.subr.mxu0 0.0
    %1626 = vmatpush1.msra.mxu0 0.0
    %1627 = vmatprep.subr.mxu0 0.0
    %1628 = vmatpush1.msra.mxu0 0.0
    %1629 = vmatprep.subr.mxu0 0.0
    %1630 = vmatpush1.msra.mxu0 0.0
    %1631 = vmatprep.subr.mxu0 0.0
    %1632 = vmatpush1.msra.mxu0 0.0
    %1633 = vmatprep.subr.mxu0 0.0
    %1634 = vmatpush1.msra.mxu0 0.0
    %1635 = vmatprep.subr.mxu0 0.0
    %1636 = vmatpush1.msra.mxu0 0.0
    %1637 = vmatprep.subr.mxu0 0.0
    %1638 = vmatpush1.msra.mxu0 0.0
    %1639 = vmatprep.subr.mxu0 0.0
    %1640 = vmatpush1.msra.mxu0 0.0
    %1641 = vmatprep.subr.mxu0 0.0
    %1642 = vmatpush1.msra.mxu0 0.0
    %1643 = vmatprep.subr.mxu0 0.0
    %1644 = vmatpush1.msra.mxu0 0.0
    %1645 = vmatprep.subr.mxu0 0.0
    %1646 = vmatpush1.msra.mxu0 0.0
    %1647 = vmatprep.mubr.f32.mxu0 0.0
    %1648 = vmatmul.mubr.f32.gmra.mrb[0].mxu0 %v1581
    %v1649 = vpop.f32.mrb[0].mxu0
    %v1650 = vadd.f32 0.0, %v1649
    %v1651 = vpop.f32.mrb[0].mxu0
    %1652 = vdwg.mxu0
    %v1653 = vadd.f32 %v1580, %v1650
    %v1654 = vadd.f32 %v1653, %v79
    %v1655 = vtanh.pop %v1654
    %v1656 = vxor.u32 %v1654, 2147483648
    %v1657 = vmul.f32 %v1656, 1.442695
    %v1658 = vpow.pop %v1657
    %v1659 = vadd.f32 %v1658, 1.0
    %v1660 = vrcp.pop %v1659
    %v1661 = vmul.f32 1.0, %v1660
    %v1662 = vsel %vm92, %v1655, %v1661
    %v1663 = vmul.f32 %v1662, %v1462
    %1665 = vrot.lane.b32.xlu0 %v1662, 64
    %v1666 = vpop.permute.xlu0 %1665
    %v1668 = vmul.f32 %v1662, %v1666
    %1670 = vrot.lane.b32.xlu0 %v1668, 32
    %v1671 = vpop.permute.xlu0 %1670
    %v1673 = vadd.f32 %v1663, %v1671
    %v1674 = vtanh.pop %v1673
    %1676 = vrot.lane.b32.xlu0 %v1674, 64
    %v1677 = vpop.permute.xlu0 %1676
    %v1679 = vmul.f32 %v1662, %v1677
    %1681 = vrot.lane.b32.xlu0 %v1679, 32
    %v1682 = vpop.permute.xlu0 %1681
    %1685 = vrot.lane.b32.xlu0 %v1575, 64
    %v1686 = vpop.permute.xlu0 %1685
    %v1688 = vsel %vm105, %v1682, %v1686
    %v1690 = vsel %vm211, %v1688, 0
    %1692 = vmatprep.subr.mxu0 0.0
    %1693 = vmatpush1.msra.mxu0 %v65
    %1694 = vmatprep.subr.mxu0 0.0
    %1695 = vmatpush1.msra.mxu0 %v66
    %1696 = vmatprep.subr.mxu0 0.0
    %1697 = vmatpush1.msra.mxu0 %v67
    %1698 = vmatprep.subr.mxu0 0.0
    %1699 = vmatpush1.msra.mxu0 %v68
    %1700 = vmatprep.subr.mxu0 0.0
    %1701 = vmatpush1.msra.mxu0 %v69
    %1702 = vmatprep.subr.mxu0 0.0
    %1703 = vmatpush1.msra.mxu0 %v70
    %1704 = vmatprep.subr.mxu0 0.0
    %1705 = vmatpush1.msra.mxu0 %v71
    %1706 = vmatprep.subr.mxu0 0.0
    %1707 = vmatpush1.msra.mxu0 %v72
    %1708 = vmatprep.subr.mxu0 0.0
    %1709 = vmatpush1.msra.mxu0 0.0
    %1710 = vmatprep.subr.mxu0 0.0
    %1711 = vmatpush1.msra.mxu0 0.0
    %1712 = vmatprep.subr.mxu0 0.0
    %1713 = vmatpush1.msra.mxu0 0.0
    %1714 = vmatprep.subr.mxu0 0.0
    %1715 = vmatpush1.msra.mxu0 0.0
    %1716 = vmatprep.subr.mxu0 0.0
    %1717 = vmatpush1.msra.mxu0 0.0
    %1718 = vmatprep.subr.mxu0 0.0
    %1719 = vmatpush1.msra.mxu0 0.0
    %1720 = vmatprep.subr.mxu0 0.0
    %1721 = vmatpush1.msra.mxu0 0.0
    %1722 = vmatprep.subr.mxu0 0.0
    %1723 = vmatpush1.msra.mxu0 0.0
    %1724 = vmatprep.subr.mxu0 0.0
    %1725 = vmatpush1.msra.mxu0 0.0
    %1726 = vmatprep.subr.mxu0 0.0
    %1727 = vmatpush1.msra.mxu0 0.0
    %1728 = vmatprep.subr.mxu0 0.0
    %1729 = vmatpush1.msra.mxu0 0.0
    %1730 = vmatprep.subr.mxu0 0.0
    %1731 = vmatpush1.msra.mxu0 0.0
    %1732 = vmatprep.subr.mxu0 0.0
    %1733 = vmatpush1.msra.mxu0 0.0
    %1734 = vmatprep.subr.mxu0 0.0
    %1735 = vmatpush1.msra.mxu0 0.0
    %1736 = vmatprep.subr.mxu0 0.0
    %1737 = vmatpush1.msra.mxu0 0.0
    %1738 = vmatprep.subr.mxu0 0.0
    %1739 = vmatpush1.msra.mxu0 0.0
    %1740 = vmatprep.subr.mxu0 0.0
    %1741 = vmatpush1.msra.mxu0 0.0
    %1742 = vmatprep.subr.mxu0 0.0
    %1743 = vmatpush1.msra.mxu0 0.0
    %1744 = vmatprep.subr.mxu0 0.0
    %1745 = vmatpush1.msra.mxu0 0.0
    %1746 = vmatprep.subr.mxu0 0.0
    %1747 = vmatpush1.msra.mxu0 0.0
    %1748 = vmatprep.subr.mxu0 0.0
    %1749 = vmatpush1.msra.mxu0 0.0
    %1750 = vmatprep.subr.mxu0 0.0
    %1751 = vmatpush1.msra.mxu0 0.0
    %1752 = vmatprep.subr.mxu0 0.0
    %1753 = vmatpush1.msra.mxu0 0.0
    %1754 = vmatprep.subr.mxu0 0.0
    %1755 = vmatpush1.msra.mxu0 0.0
    %1756 = vmatprep.mubr.f32.mxu0 0.0
    %1757 = vmatmul.mubr.f32.gmra.mrb[0].mxu0 %v1690
    %v1758 = vpop.f32.mrb[0].mxu0
    %v1759 = vadd.f32 %v86, %v1758
    %v1760 = vpop.f32.mrb[0].mxu0
    %1761 = vdwg.mxu0
    %v1762 = vtanh.pop %v1759
    %v1763 = vxor.u32 %v1759, 2147483648
    %v1764 = vmul.f32 %v1763, 1.442695
    %v1765 = vpow.pop %v1764
    %v1766 = vadd.f32 %v1765, 1.0
    %v1767 = vrcp.pop %v1766
    %v1768 = vmul.f32 1.0, %v1767
    %v1769 = vsel %vm92, %v1762, %v1768
    %v1770 = vmul.f32 %v1769, %v1569
    %1772 = vrot.lane.b32.xlu0 %v1769, 64
    %v1773 = vpop.permute.xlu0 %1772
    %v1775 = vmul.f32 %v1769, %v1773
    %1777 = vrot.lane.b32.xlu0 %v1775, 32
    %v1778 = vpop.permute.xlu0 %1777
    %v1780 = vadd.f32 %v1770, %v1778
    %v1781 = vtanh.pop %v1780
    %1783 = vrot.lane.b32.xlu0 %v1781, 64
    %v1784 = vpop.permute.xlu0 %1783
    %v1786 = vmul.f32 %v1769, %v1784
    %v1788 = vlaneseq
    %v1789 = vshrl.u32 %v1788, 7
    %v1790 = vsub.s32 0, %v1789
    %v1791 = vrot.slane %v73, %v1790
    %1792 = vrot.lane.b32.xlu0 %v1791, 96
    %v1793 = vpop.permute.xlu0 %1792
    %v1795 = vmul.f32 %v1786, %v1793
    %1797 = vrot.lane.b32.xlu0 %v1795, 32
    %v1798 = vpop.permute.xlu0 %1797
    %vm1800 = vcmask 254976
    %v1801 = vsel %vm1800, %v1798, 0.0
    %1802 = vadd.xlane.f32.xlu0 %v1801
    %v1803 = vpop.xlane.xlu0 %1802
    %v1804 = vld [vmem:[#allocation2] sm:$0x1]
    %v1806 = vlaneseq
    %v1807 = vshrl.u32 %v1806, 7
    %v1808 = vsub.s32 0, %v1807
    %v1809 = vrot.slane %v1804, %v1808
    %v1811 = vadd.f32 %v1803, %v1809
    %vm1812 = vcmask 1024
    %1813 = vst.msk [vmem:[%s8] sm:$0x3] %vm1812, %v1811
    // Predicated region
    $region42: #{lstm_forward.1} parent=1 // pred_check
      _
    $region43: #{lstm_forward.1} parent=1 // pred_check_branch
      %1815 = sbr.rel (0) target = $region45
    $region44: #{lstm_forward.1} parent=1 // pred_region
      _
    $region45: #{lstm_forward.1} parent=1 // pred_fallthru
      _
    // Predicated region
    $region46: #{lstm_forward.1} parent=1 // pred_check
      _
    $region47: #{lstm_forward.1} parent=1 // pred_check_branch
      %1817 = sbr.rel (0) target = $region49
    $region48: #{lstm_forward.1} parent=1 // pred_region
      _
    $region49: #{lstm_forward.1} parent=1 // pred_fallthru
      _
    %1818 = vsyncpa [#allocation4], 1
    %1819 = vsyncpa [#allocation6], 1

</llo_original>
